<compile_context>
chip_gen: v6e
topology: v6e:2x2x1
jax: 0.10.0
libtpu: 0.0.40
codegen_flags: <defaults>
</compile_context>

<pallas_src>
import functools

import jax
import jax.numpy as jnp
from jax import lax
from jax.experimental import pallas as pl
from jax.experimental.pallas import tpu as pltpu


# ----------------------------------------------------------------------------
# Fused kernel: all GRU layers + FC + LogSoftmax, single grid point.
#
# PyTorch gate ordering in the packed (3H) weights: [r, z, n].
#   r  = sigmoid(x W_ir^T + b_ir + h W_hr^T + b_hr)
#   z  = sigmoid(x W_iz^T + b_iz + h W_hz^T + b_hz)
#   n  = tanh   (x W_in^T + b_in + r * (h W_hn^T + b_hn))
#   h' = (1 - z) * n + z * h                (computed as n + z*(h-n))
# ----------------------------------------------------------------------------
def _fused_gru_kernel(*refs, T, Bp, H, L):
    """Ref layout:
      [0]              x_flat   (T*Bp, D)   time-major, batch padded & flattened
      [1+4l .. 4+4l]   per layer l: wih_t (D_in,3H), whh_t (H,3H),
                                    bi (1,3H)=[b_ir+b_hr, b_iz+b_hz, b_in],
                                    bhn (1,H)=b_hn
      [1+4L]           wfc_t   (H, O)
      [2+4L]           bfc     (1, O)
      [3+4L]           out     (Bp, O)
      [4+4L]           seq_scr (T*Bp, H)    inter-layer hidden sequence (VMEM)
      [5+4L]           gi_scr  (T*Bp, 3H)   hoisted input projection   (VMEM)
    """
    x_ref = refs[0]
    wfc_ref = refs[1 + 4 * L]
    bfc_ref = refs[2 + 4 * L]
    out_ref = refs[3 + 4 * L]
    seq_scr = refs[4 + 4 * L]
    gi_scr = refs[5 + 4 * L]

    H2 = 2 * H
    H3 = 3 * H

    h = jnp.zeros((Bp, H), jnp.float32)
    for l in range(L):
        wih_ref = refs[1 + 4 * l]
        whh_ref = refs[2 + 4 * l]
        bi_ref = refs[3 + 4 * l]
        bhn_ref = refs[4 + 4 * l]

        # Hoisted input projection: ONE matmul over the whole sequence.
        src = x_ref[...] if l == 0 else seq_scr[...]
        gi_scr[...] = (
            jnp.dot(src, wih_ref[...], preferred_element_type=jnp.float32)
            + bi_ref[...]
        )

        whh = whh_ref[...]          # (H, 3H) resident across the time loop
        bhn = bhn_ref[...]          # (1, H)
        is_last = l == L - 1

        h = jnp.zeros((Bp, H), jnp.float32)   # zero initial hidden state

        def body(t, h_prev, whh=whh, bhn=bhn, is_last=is_last):
            base = pl.multiple_of(t * Bp, Bp)          # sublane-aligned offset
            gi_t = gi_scr[pl.ds(base, Bp), :]          # (Bp, 3H)
            gh = jnp.dot(h_prev, whh, preferred_element_type=jnp.float32)
            rz = jax.nn.sigmoid(gi_t[:, :H2] + gh[:, :H2])
            r = rz[:, :H]
            z = rz[:, H:H2]
            n = jnp.tanh(gi_t[:, H2:H3] + r * (gh[:, H2:H3] + bhn))
            h_new = n + z * (h_prev - n)
            if not is_last:
                # Feed the next layer's hoisted projection; last layer only
                # needs its final hidden state, so skip the stores.
                seq_scr[pl.ds(base, Bp), :] = h_new
            return h_new

        h = lax.fori_loop(0, T, body, h, unroll=(T <= 16))

    # FC + LogSoftmax(dim=1) epilogue on the final hidden state (== out[:, -1, :]).
    logits = (
        jnp.dot(h, wfc_ref[...], preferred_element_type=jnp.float32)
        + bfc_ref[...]
    )
    m = jnp.max(logits, axis=-1, keepdims=True)
    lse = jnp.log(jnp.sum(jnp.exp(logits - m), axis=-1, keepdims=True)) + m
    out_ref[...] = (logits - lse).astype(out_ref.dtype)


# ----------------------------------------------------------------------------
# Parameter construction (PyTorch layout) + one-time kernel-layout preparation
# ----------------------------------------------------------------------------
def init_gru_params(key, input_dim, hidden_dim, layer_dim, output_dim):
    """Deterministic init matching PyTorch shapes: U(-1/sqrt(H), 1/sqrt(H))."""
    params = {"layers": []}
    bound = 1.0 / jnp.sqrt(jnp.float32(hidden_dim))
    for layer in range(layer_dim):
        d_in = input_dim if layer == 0 else hidden_dim
        key, k1, k2, k3, k4 = jax.random.split(key, 5)
        params["layers"].append({
            "w_ih": jax.random.uniform(k1, (3 * hidden_dim, d_in),
                                       jnp.float32, -bound, bound),
            "w_hh": jax.random.uniform(k2, (3 * hidden_dim, hidden_dim),
                                       jnp.float32, -bound, bound),
            "b_ih": jax.random.uniform(k3, (3 * hidden_dim,),
                                       jnp.float32, -bound, bound),
            "b_hh": jax.random.uniform(k4, (3 * hidden_dim,),
                                       jnp.float32, -bound, bound),
        })
    key, k5, k6 = jax.random.split(key, 3)
    params["fc_w"] = jax.random.uniform(k5, (output_dim, hidden_dim),
                                        jnp.float32, -bound, bound)
    params["fc_b"] = jax.random.uniform(k6, (output_dim,),
                                        jnp.float32, -bound, bound)
    return params


def prepare_gru_params(params):
    """One-time conversion to kernel layout (transposed weights, packed biases)."""
    H = params["layers"][0]["w_hh"].shape[1]
    prepped = {"H": H, "layers": []}
    for lp in params["layers"]:
        w_ih = jnp.asarray(lp["w_ih"], jnp.float32)        # (3H, D_in)
        w_hh = jnp.asarray(lp["w_hh"], jnp.float32)        # (3H, H)
        b_ih = jnp.asarray(lp["b_ih"], jnp.float32)        # (3H,)
        b_hh = jnp.asarray(lp["b_hh"], jnp.float32)        # (3H,)
        bi = jnp.concatenate([
            b_ih[:2 * H] + b_hh[:2 * H],                   # b_ir+b_hr, b_iz+b_hz
            b_ih[2 * H:],                                  # b_in
        ]).reshape(1, 3 * H)
        bhn = b_hh[2 * H:].reshape(1, H)                   # b_hn (inside r*(...))
        prepped["layers"].append({
            "wih_t": w_ih.T,                               # (D_in, 3H)
            "whh_t": w_hh.T,                               # (H, 3H)
            "bi": bi,
            "bhn": bhn,
        })
    prepped["wfc_t"] = jnp.asarray(params["fc_w"], jnp.float32).T   # (H, O)
    prepped["bfc"] = jnp.asarray(params["fc_b"], jnp.float32).reshape(1, -1)
    return prepped


# ----------------------------------------------------------------------------
# Forward wrapper: batch-first (B, T, D) input, (B, O) log-probabilities out.
# ----------------------------------------------------------------------------
def gru_forward(prepped, x_btd):
    B, T, D = x_btd.shape
    H = prepped["H"]
    L = len(prepped["layers"])
    O = prepped["wfc_t"].shape[1]
    Bp = max(8, ((B + 7) // 8) * 8)                # pad batch to sublane multiple

    x_tbd = jnp.transpose(x_btd, (1, 0, 2)).astype(jnp.float32)    # (T, B, D)
    if Bp != B:
        x_tbd = jnp.pad(x_tbd, ((0, 0), (0, Bp - B), (0, 0)))
    x_flat = x_tbd.reshape(T * Bp, D)                              # (T*Bp, D)

    flat_inputs = [x_flat]
    in_specs = [pl.BlockSpec((T * Bp, D), lambda i: (0, 0))]
    for lp in prepped["layers"]:
        d_in = lp["wih_t"].shape[0]
        flat_inputs += [lp["wih_t"], lp["whh_t"], lp["bi"], lp["bhn"]]
        in_specs += [
            pl.BlockSpec((d_in, 3 * H), lambda i: (0, 0)),
            pl.BlockSpec((H, 3 * H), lambda i: (0, 0)),
            pl.BlockSpec((1, 3 * H), lambda i: (0, 0)),
            pl.BlockSpec((1, H), lambda i: (0, 0)),
        ]
    flat_inputs += [prepped["wfc_t"], prepped["bfc"]]
    in_specs += [
        pl.BlockSpec((H, O), lambda i: (0, 0)),
        pl.BlockSpec((1, O), lambda i: (0, 0)),
    ]

    kernel = functools.partial(_fused_gru_kernel, T=T, Bp=Bp, H=H, L=L)

    out = pl.pallas_call(
        kernel,
        out_shape=jax.ShapeDtypeStruct((Bp, O), jnp.float32),
        grid_spec=pltpu.PrefetchScalarGridSpec(
            num_scalar_prefetch=0,
            grid=(1,),                     # single invocation; recurrence is in-kernel
            in_specs=in_specs,
            out_specs=pl.BlockSpec((Bp, O), lambda i: (0, 0)),
            scratch_shapes=[
                pltpu.VMEM((T * Bp, H), jnp.float32),      # inter-layer sequence
                pltpu.VMEM((T * Bp, 3 * H), jnp.float32),  # hoisted input projection
            ],
        ),
        compiler_params=pltpu.CompilerParams(
            # The time recurrence lives inside the kernel; the (single) grid
            # axis must stay "arbitrary" — never mark it "parallel".
            dimension_semantics=("arbitrary",),
        ),
    )(*flat_inputs)
    return out[:B]


# ----------------------------------------------------------------------------
# Pure-JAX reference (mirrors PyTorch nn.GRU math) for correctness checking.
# ----------------------------------------------------------------------------
def gru_reference(params, x_btd):
    x = jnp.transpose(x_btd, (1, 0, 2)).astype(jnp.float32)   # (T, B, D)
    T, B, _ = x.shape
    seq = x
    for lp in params["layers"]:
        H = lp["w_hh"].shape[1]
        h = jnp.zeros((B, H), jnp.float32)
        outs = []
        for t in range(T):
            gi = seq[t] @ lp["w_ih"].T + lp["b_ih"]
            gh = h @ lp["w_hh"].T + lp["b_hh"]
            r = jax.nn.sigmoid(gi[:, :H] + gh[:, :H])
            z = jax.nn.sigmoid(gi[:, H:2 * H] + gh[:, H:2 * H])
            n = jnp.tanh(gi[:, 2 * H:] + r * gh[:, 2 * H:])
            h = (1.0 - z) * n + z * h
            outs.append(h)
        seq = jnp.stack(outs)
    logits = seq[-1] @ params["fc_w"].T + params["fc_b"]
    return jax.nn.log_softmax(logits, axis=1)


if __name__ == "__main__":
    # Small shapes implied by the module: (batch, seq, input_dim)
    B, T, D = 4, 8, 16
    H, L, O = 32, 2, 10

    key = jax.random.PRNGKey(0)
    key, kx, kp = jax.random.split(key, 3)
    x = jax.random.normal(kx, (B, T, D), jnp.float32)

    params = init_gru_params(kp, D, H, L, O)
    prepped = prepare_gru_params(params)

    out = gru_forward(prepped, x)
    out = jax.block_until_ready(out)
    assert out.shape == (B, O)

    ref = gru_reference(params, x)
    assert jnp.allclose(out, ref, atol=1e-4, rtol=1e-4), float(
        jnp.max(jnp.abs(out - ref)))

    print("KERNEL_OK")
</pallas_src>

<mosaic_0001>
module attributes {stable_mosaic.version = 11 : i64} {
  func.func @_fused_gru_kernel(%arg0: i32, %arg1: memref<64x16xf32, #tpu.memory_space<vmem>>, %arg2: memref<16x96xf32, #tpu.memory_space<vmem>>, %arg3: memref<32x96xf32, #tpu.memory_space<vmem>>, %arg4: memref<1x96xf32, #tpu.memory_space<vmem>>, %arg5: memref<1x32xf32, #tpu.memory_space<vmem>>, %arg6: memref<32x96xf32, #tpu.memory_space<vmem>>, %arg7: memref<32x96xf32, #tpu.memory_space<vmem>>, %arg8: memref<1x96xf32, #tpu.memory_space<vmem>>, %arg9: memref<1x32xf32, #tpu.memory_space<vmem>>, %arg10: memref<32x10xf32, #tpu.memory_space<vmem>>, %arg11: memref<1x10xf32, #tpu.memory_space<vmem>>, %arg12: memref<8x10xf32, #tpu.memory_space<vmem>>, %arg13: memref<64x32xf32, #tpu.memory_space<vmem>>, %arg14: memref<64x96xf32, #tpu.memory_space<vmem>>) attributes {dimension_semantics = [#tpu.dimension_semantics<arbitrary>], iteration_bounds = array<i64: 1>, scalar_prefetch = 0 : i64, scratch_operands = 2 : i64, tpu.core_type = #tpu.core_type<tc>, window_params = [{pipeline_mode = #tpu.pipeline_mode<synchronous>, transform_indices = @transform_0, window_bounds = array<i64: 64, 16>}, {pipeline_mode = #tpu.pipeline_mode<synchronous>, transform_indices = @transform_1, window_bounds = array<i64: 16, 96>}, {pipeline_mode = #tpu.pipeline_mode<synchronous>, transform_indices = @transform_2, window_bounds = array<i64: 32, 96>}, {pipeline_mode = #tpu.pipeline_mode<synchronous>, transform_indices = @transform_3, window_bounds = array<i64: 1, 96>}, {pipeline_mode = #tpu.pipeline_mode<synchronous>, transform_indices = @transform_4, window_bounds = array<i64: 1, 32>}, {pipeline_mode = #tpu.pipeline_mode<synchronous>, transform_indices = @transform_5, window_bounds = array<i64: 32, 96>}, {pipeline_mode = #tpu.pipeline_mode<synchronous>, transform_indices = @transform_6, window_bounds = array<i64: 32, 96>}, {pipeline_mode = #tpu.pipeline_mode<synchronous>, transform_indices = @transform_7, window_bounds = array<i64: 1, 96>}, {pipeline_mode = #tpu.pipeline_mode<synchronous>, transform_indices = @transform_8, window_bounds = array<i64: 1, 32>}, {pipeline_mode = #tpu.pipeline_mode<synchronous>, transform_indices = @transform_9, window_bounds = array<i64: 32, 10>}, {pipeline_mode = #tpu.pipeline_mode<synchronous>, transform_indices = @transform_10, window_bounds = array<i64: 1, 10>}, {pipeline_mode = #tpu.pipeline_mode<synchronous>, transform_indices = @transform_11, window_bounds = array<i64: 8, 10>}]} {
    %c0 = arith.constant 0 : index
    %c0_0 = arith.constant 0 : index
    %0 = vector.load %arg1[%c0, %c0_0] : memref<64x16xf32, #tpu.memory_space<vmem>>, vector<64x16xf32>
    %c0_1 = arith.constant 0 : index
    %c0_2 = arith.constant 0 : index
    %1 = vector.load %arg2[%c0_1, %c0_2] : memref<16x96xf32, #tpu.memory_space<vmem>>, vector<16x96xf32>
    %cst = arith.constant dense<0.000000e+00> : vector<64x96xf32>
    %2 = tpu.matmul %0, %1, %cst {dimension_numbers = #tpu.dot_dimension_numbers<[1], [0], [0], [1], [0, 0, 1, 1], [], []>} : vector<64x16xf32>, vector<16x96xf32>, vector<64x96xf32> -> vector<64x96xf32>
    %c0_3 = arith.constant 0 : index
    %c0_4 = arith.constant 0 : index
    %3 = vector.load %arg4[%c0_3, %c0_4] : memref<1x96xf32, #tpu.memory_space<vmem>>, vector<1x96xf32>
    %4 = vector.broadcast %3 : vector<1x96xf32> to vector<64x96xf32>
    %5 = arith.addf %2, %4 : vector<64x96xf32>
    %c0_5 = arith.constant 0 : index
    %c0_6 = arith.constant 0 : index
    %6 = vector.load %arg14[%c0_5, %c0_6] : memref<64x96xf32, #tpu.memory_space<vmem>>, vector<64x96xf32>
    tpu.vector_store %arg14[%c0_5, %c0_6], %5 {strides = array<i32>} : memref<64x96xf32, #tpu.memory_space<vmem>>, vector<64x96xf32>,
    %c0_7 = arith.constant 0 : index
    %c0_8 = arith.constant 0 : index
    %7 = vector.load %arg3[%c0_7, %c0_8] : memref<32x96xf32, #tpu.memory_space<vmem>>, vector<32x96xf32>
    %c0_9 = arith.constant 0 : index
    %c0_10 = arith.constant 0 : index
    %8 = vector.load %arg5[%c0_9, %c0_10] : memref<1x32xf32, #tpu.memory_space<vmem>>, vector<1x32xf32>
    %cst_11 = arith.constant 0.000000e+00 : f32
    %9 = vector.broadcast %cst_11 : f32 to vector<8x32xf32>
    %c0_i32 = arith.constant 0 : i32
    %c8_i32 = arith.constant 8 : i32
    %10 = arith.muli %c0_i32, %c8_i32 : i32
    %11 = tpu.assume_multiple %10, 8 : i32
    %12 = arith.index_cast %11 : i32 to index
    %c0_12 = arith.constant 0 : index
    %13 = vector.load %arg14[%12, %c0_12] : memref<64x96xf32, #tpu.memory_space<vmem>>, vector<8x96xf32>
    %cst_13 = arith.constant dense<0.000000e+00> : vector<8x96xf32>
    %14 = tpu.matmul %9, %7, %cst_13 {dimension_numbers = #tpu.dot_dimension_numbers<[1], [0], [0], [1], [0, 0, 1, 1], [], []>} : vector<8x32xf32>, vector<32x96xf32>, vector<8x96xf32> -> vector<8x96xf32>
    %15 = vector.extract_strided_slice %13 {offsets = [0, 0], sizes = [8, 64], strides = [1, 1]} : vector<8x96xf32> to vector<8x64xf32>
    %16 = vector.extract_strided_slice %14 {offsets = [0, 0], sizes = [8, 64], strides = [1, 1]} : vector<8x96xf32> to vector<8x64xf32>
    %17 = arith.addf %15, %16 : vector<8x64xf32>
    %18 = arith.negf %17 : vector<8x64xf32>
    %19 = math.exp %18 : vector<8x64xf32>
    %cst_14 = arith.constant 1.000000e+00 : f32
    %20 = vector.broadcast %cst_14 : f32 to vector<8x64xf32>
    %21 = arith.addf %20, %19 : vector<8x64xf32>
    %22 = arith.divf %20, %21 : vector<8x64xf32>
    %23 = vector.extract_strided_slice %22 {offsets = [0, 0], sizes = [8, 32], strides = [1, 1]} : vector<8x64xf32> to vector<8x32xf32>
    %24 = vector.extract_strided_slice %22 {offsets = [0, 32], sizes = [8, 32], strides = [1, 1]} : vector<8x64xf32> to vector<8x32xf32>
    %25 = vector.extract_strided_slice %13 {offsets = [0, 64], sizes = [8, 32], strides = [1, 1]} : vector<8x96xf32> to vector<8x32xf32>
    %26 = vector.extract_strided_slice %14 {offsets = [0, 64], sizes = [8, 32], strides = [1, 1]} : vector<8x96xf32> to vector<8x32xf32>
    %27 = vector.broadcast %8 : vector<1x32xf32> to vector<8x32xf32>
    %28 = arith.addf %26, %27 : vector<8x32xf32>
    %29 = arith.mulf %23, %28 : vector<8x32xf32>
    %30 = arith.addf %25, %29 : vector<8x32xf32>
    %31 = math.tanh %30 : vector<8x32xf32>
    %32 = arith.subf %9, %31 : vector<8x32xf32>
    %33 = arith.mulf %24, %32 : vector<8x32xf32>
    %34 = arith.addf %31, %33 : vector<8x32xf32>
    %35 = arith.index_cast %11 : i32 to index
    %c0_15 = arith.constant 0 : index
    %36 = vector.load %arg13[%35, %c0_15] : memref<64x32xf32, #tpu.memory_space<vmem>>, vector<8x32xf32>
    tpu.vector_store %arg13[%35, %c0_15], %34 {strides = array<i32>} : memref<64x32xf32, #tpu.memory_space<vmem>>, vector<8x32xf32>,
    %c1_i32 = arith.constant 1 : i32
    %c8_i32_16 = arith.constant 8 : i32
    %37 = arith.muli %c1_i32, %c8_i32_16 : i32
    %38 = tpu.assume_multiple %37, 8 : i32
    %39 = arith.index_cast %38 : i32 to index
    %c0_17 = arith.constant 0 : index
    %40 = vector.load %arg14[%39, %c0_17] : memref<64x96xf32, #tpu.memory_space<vmem>>, vector<8x96xf32>
    %cst_18 = arith.constant dense<0.000000e+00> : vector<8x96xf32>
    %41 = tpu.matmul %34, %7, %cst_18 {dimension_numbers = #tpu.dot_dimension_numbers<[1], [0], [0], [1], [0, 0, 1, 1], [], []>} : vector<8x32xf32>, vector<32x96xf32>, vector<8x96xf32> -> vector<8x96xf32>
    %42 = vector.extract_strided_slice %40 {offsets = [0, 0], sizes = [8, 64], strides = [1, 1]} : vector<8x96xf32> to vector<8x64xf32>
    %43 = vector.extract_strided_slice %41 {offsets = [0, 0], sizes = [8, 64], strides = [1, 1]} : vector<8x96xf32> to vector<8x64xf32>
    %44 = arith.addf %42, %43 : vector<8x64xf32>
    %45 = arith.negf %44 : vector<8x64xf32>
    %46 = math.exp %45 : vector<8x64xf32>
    %cst_19 = arith.constant 1.000000e+00 : f32
    %47 = vector.broadcast %cst_19 : f32 to vector<8x64xf32>
    %48 = arith.addf %47, %46 : vector<8x64xf32>
    %49 = arith.divf %47, %48 : vector<8x64xf32>
    %50 = vector.extract_strided_slice %49 {offsets = [0, 0], sizes = [8, 32], strides = [1, 1]} : vector<8x64xf32> to vector<8x32xf32>
    %51 = vector.extract_strided_slice %49 {offsets = [0, 32], sizes = [8, 32], strides = [1, 1]} : vector<8x64xf32> to vector<8x32xf32>
    %52 = vector.extract_strided_slice %40 {offsets = [0, 64], sizes = [8, 32], strides = [1, 1]} : vector<8x96xf32> to vector<8x32xf32>
    %53 = vector.extract_strided_slice %41 {offsets = [0, 64], sizes = [8, 32], strides = [1, 1]} : vector<8x96xf32> to vector<8x32xf32>
    %54 = vector.broadcast %8 : vector<1x32xf32> to vector<8x32xf32>
    %55 = arith.addf %53, %54 : vector<8x32xf32>
    %56 = arith.mulf %50, %55 : vector<8x32xf32>
    %57 = arith.addf %52, %56 : vector<8x32xf32>
    %58 = math.tanh %57 : vector<8x32xf32>
    %59 = arith.subf %34, %58 : vector<8x32xf32>
    %60 = arith.mulf %51, %59 : vector<8x32xf32>
    %61 = arith.addf %58, %60 : vector<8x32xf32>
    %62 = arith.index_cast %38 : i32 to index
    %c0_20 = arith.constant 0 : index
    %63 = vector.load %arg13[%62, %c0_20] : memref<64x32xf32, #tpu.memory_space<vmem>>, vector<8x32xf32>
    tpu.vector_store %arg13[%62, %c0_20], %61 {strides = array<i32>} : memref<64x32xf32, #tpu.memory_space<vmem>>, vector<8x32xf32>,
    %c2_i32 = arith.constant 2 : i32
    %c8_i32_21 = arith.constant 8 : i32
    %64 = arith.muli %c2_i32, %c8_i32_21 : i32
    %65 = tpu.assume_multiple %64, 8 : i32
    %66 = arith.index_cast %65 : i32 to index
    %c0_22 = arith.constant 0 : index
    %67 = vector.load %arg14[%66, %c0_22] : memref<64x96xf32, #tpu.memory_space<vmem>>, vector<8x96xf32>
    %cst_23 = arith.constant dense<0.000000e+00> : vector<8x96xf32>
    %68 = tpu.matmul %61, %7, %cst_23 {dimension_numbers = #tpu.dot_dimension_numbers<[1], [0], [0], [1], [0, 0, 1, 1], [], []>} : vector<8x32xf32>, vector<32x96xf32>, vector<8x96xf32> -> vector<8x96xf32>
    %69 = vector.extract_strided_slice %67 {offsets = [0, 0], sizes = [8, 64], strides = [1, 1]} : vector<8x96xf32> to vector<8x64xf32>
    %70 = vector.extract_strided_slice %68 {offsets = [0, 0], sizes = [8, 64], strides = [1, 1]} : vector<8x96xf32> to vector<8x64xf32>
    %71 = arith.addf %69, %70 : vector<8x64xf32>
    %72 = arith.negf %71 : vector<8x64xf32>
    %73 = math.exp %72 : vector<8x64xf32>
    %cst_24 = arith.constant 1.000000e+00 : f32
    %74 = vector.broadcast %cst_24 : f32 to vector<8x64xf32>
    %75 = arith.addf %74, %73 : vector<8x64xf32>
    %76 = arith.divf %74, %75 : vector<8x64xf32>
    %77 = vector.extract_strided_slice %76 {offsets = [0, 0], sizes = [8, 32], strides = [1, 1]} : vector<8x64xf32> to vector<8x32xf32>
    %78 = vector.extract_strided_slice %76 {offsets = [0, 32], sizes = [8, 32], strides = [1, 1]} : vector<8x64xf32> to vector<8x32xf32>
    %79 = vector.extract_strided_slice %67 {offsets = [0, 64], sizes = [8, 32], strides = [1, 1]} : vector<8x96xf32> to vector<8x32xf32>
    %80 = vector.extract_strided_slice %68 {offsets = [0, 64], sizes = [8, 32], strides = [1, 1]} : vector<8x96xf32> to vector<8x32xf32>
    %81 = vector.broadcast %8 : vector<1x32xf32> to vector<8x32xf32>
    %82 = arith.addf %80, %81 : vector<8x32xf32>
    %83 = arith.mulf %77, %82 : vector<8x32xf32>
    %84 = arith.addf %79, %83 : vector<8x32xf32>
    %85 = math.tanh %84 : vector<8x32xf32>
    %86 = arith.subf %61, %85 : vector<8x32xf32>
    %87 = arith.mulf %78, %86 : vector<8x32xf32>
    %88 = arith.addf %85, %87 : vector<8x32xf32>
    %89 = arith.index_cast %65 : i32 to index
    %c0_25 = arith.constant 0 : index
    %90 = vector.load %arg13[%89, %c0_25] : memref<64x32xf32, #tpu.memory_space<vmem>>, vector<8x32xf32>
    tpu.vector_store %arg13[%89, %c0_25], %88 {strides = array<i32>} : memref<64x32xf32, #tpu.memory_space<vmem>>, vector<8x32xf32>,
    %c3_i32 = arith.constant 3 : i32
    %c8_i32_26 = arith.constant 8 : i32
    %91 = arith.muli %c3_i32, %c8_i32_26 : i32
    %92 = tpu.assume_multiple %91, 8 : i32
    %93 = arith.index_cast %92 : i32 to index
    %c0_27 = arith.constant 0 : index
    %94 = vector.load %arg14[%93, %c0_27] : memref<64x96xf32, #tpu.memory_space<vmem>>, vector<8x96xf32>
    %cst_28 = arith.constant dense<0.000000e+00> : vector<8x96xf32>
    %95 = tpu.matmul %88, %7, %cst_28 {dimension_numbers = #tpu.dot_dimension_numbers<[1], [0], [0], [1], [0, 0, 1, 1], [], []>} : vector<8x32xf32>, vector<32x96xf32>, vector<8x96xf32> -> vector<8x96xf32>
    %96 = vector.extract_strided_slice %94 {offsets = [0, 0], sizes = [8, 64], strides = [1, 1]} : vector<8x96xf32> to vector<8x64xf32>
    %97 = vector.extract_strided_slice %95 {offsets = [0, 0], sizes = [8, 64], strides = [1, 1]} : vector<8x96xf32> to vector<8x64xf32>
    %98 = arith.addf %96, %97 : vector<8x64xf32>
    %99 = arith.negf %98 : vector<8x64xf32>
    %100 = math.exp %99 : vector<8x64xf32>
    %cst_29 = arith.constant 1.000000e+00 : f32
    %101 = vector.broadcast %cst_29 : f32 to vector<8x64xf32>
    %102 = arith.addf %101, %100 : vector<8x64xf32>
    %103 = arith.divf %101, %102 : vector<8x64xf32>
    %104 = vector.extract_strided_slice %103 {offsets = [0, 0], sizes = [8, 32], strides = [1, 1]} : vector<8x64xf32> to vector<8x32xf32>
    %105 = vector.extract_strided_slice %103 {offsets = [0, 32], sizes = [8, 32], strides = [1, 1]} : vector<8x64xf32> to vector<8x32xf32>
    %106 = vector.extract_strided_slice %94 {offsets = [0, 64], sizes = [8, 32], strides = [1, 1]} : vector<8x96xf32> to vector<8x32xf32>
    %107 = vector.extract_strided_slice %95 {offsets = [0, 64], sizes = [8, 32], strides = [1, 1]} : vector<8x96xf32> to vector<8x32xf32>
    %108 = vector.broadcast %8 : vector<1x32xf32> to vector<8x32xf32>
    %109 = arith.addf %107, %108 : vector<8x32xf32>
    %110 = arith.mulf %104, %109 : vector<8x32xf32>
    %111 = arith.addf %106, %110 : vector<8x32xf32>
    %112 = math.tanh %111 : vector<8x32xf32>
    %113 = arith.subf %88, %112 : vector<8x32xf32>
    %114 = arith.mulf %105, %113 : vector<8x32xf32>
    %115 = arith.addf %112, %114 : vector<8x32xf32>
    %116 = arith.index_cast %92 : i32 to index
    %c0_30 = arith.constant 0 : index
    %117 = vector.load %arg13[%116, %c0_30] : memref<64x32xf32, #tpu.memory_space<vmem>>, vector<8x32xf32>
    tpu.vector_store %arg13[%116, %c0_30], %115 {strides = array<i32>} : memref<64x32xf32, #tpu.memory_space<vmem>>, vector<8x32xf32>,
    %c4_i32 = arith.constant 4 : i32
    %c8_i32_31 = arith.constant 8 : i32
    %118 = arith.muli %c4_i32, %c8_i32_31 : i32
    %119 = tpu.assume_multiple %118, 8 : i32
    %120 = arith.index_cast %119 : i32 to index
    %c0_32 = arith.constant 0 : index
    %121 = vector.load %arg14[%120, %c0_32] : memref<64x96xf32, #tpu.memory_space<vmem>>, vector<8x96xf32>
    %cst_33 = arith.constant dense<0.000000e+00> : vector<8x96xf32>
    %122 = tpu.matmul %115, %7, %cst_33 {dimension_numbers = #tpu.dot_dimension_numbers<[1], [0], [0], [1], [0, 0, 1, 1], [], []>} : vector<8x32xf32>, vector<32x96xf32>, vector<8x96xf32> -> vector<8x96xf32>
    %123 = vector.extract_strided_slice %121 {offsets = [0, 0], sizes = [8, 64], strides = [1, 1]} : vector<8x96xf32> to vector<8x64xf32>
    %124 = vector.extract_strided_slice %122 {offsets = [0, 0], sizes = [8, 64], strides = [1, 1]} : vector<8x96xf32> to vector<8x64xf32>
    %125 = arith.addf %123, %124 : vector<8x64xf32>
    %126 = arith.negf %125 : vector<8x64xf32>
    %127 = math.exp %126 : vector<8x64xf32>
    %cst_34 = arith.constant 1.000000e+00 : f32
    %128 = vector.broadcast %cst_34 : f32 to vector<8x64xf32>
    %129 = arith.addf %128, %127 : vector<8x64xf32>
    %130 = arith.divf %128, %129 : vector<8x64xf32>
    %131 = vector.extract_strided_slice %130 {offsets = [0, 0], sizes = [8, 32], strides = [1, 1]} : vector<8x64xf32> to vector<8x32xf32>
    %132 = vector.extract_strided_slice %130 {offsets = [0, 32], sizes = [8, 32], strides = [1, 1]} : vector<8x64xf32> to vector<8x32xf32>
    %133 = vector.extract_strided_slice %121 {offsets = [0, 64], sizes = [8, 32], strides = [1, 1]} : vector<8x96xf32> to vector<8x32xf32>
    %134 = vector.extract_strided_slice %122 {offsets = [0, 64], sizes = [8, 32], strides = [1, 1]} : vector<8x96xf32> to vector<8x32xf32>
    %135 = vector.broadcast %8 : vector<1x32xf32> to vector<8x32xf32>
    %136 = arith.addf %134, %135 : vector<8x32xf32>
    %137 = arith.mulf %131, %136 : vector<8x32xf32>
    %138 = arith.addf %133, %137 : vector<8x32xf32>
    %139 = math.tanh %138 : vector<8x32xf32>
    %140 = arith.subf %115, %139 : vector<8x32xf32>
    %141 = arith.mulf %132, %140 : vector<8x32xf32>
    %142 = arith.addf %139, %141 : vector<8x32xf32>
    %143 = arith.index_cast %119 : i32 to index
    %c0_35 = arith.constant 0 : index
    %144 = vector.load %arg13[%143, %c0_35] : memref<64x32xf32, #tpu.memory_space<vmem>>, vector<8x32xf32>
    tpu.vector_store %arg13[%143, %c0_35], %142 {strides = array<i32>} : memref<64x32xf32, #tpu.memory_space<vmem>>, vector<8x32xf32>,
    %c5_i32 = arith.constant 5 : i32
    %c8_i32_36 = arith.constant 8 : i32
    %145 = arith.muli %c5_i32, %c8_i32_36 : i32
    %146 = tpu.assume_multiple %145, 8 : i32
    %147 = arith.index_cast %146 : i32 to index
    %c0_37 = arith.constant 0 : index
    %148 = vector.load %arg14[%147, %c0_37] : memref<64x96xf32, #tpu.memory_space<vmem>>, vector<8x96xf32>
    %cst_38 = arith.constant dense<0.000000e+00> : vector<8x96xf32>
    %149 = tpu.matmul %142, %7, %cst_38 {dimension_numbers = #tpu.dot_dimension_numbers<[1], [0], [0], [1], [0, 0, 1, 1], [], []>} : vector<8x32xf32>, vector<32x96xf32>, vector<8x96xf32> -> vector<8x96xf32>
    %150 = vector.extract_strided_slice %148 {offsets = [0, 0], sizes = [8, 64], strides = [1, 1]} : vector<8x96xf32> to vector<8x64xf32>
    %151 = vector.extract_strided_slice %149 {offsets = [0, 0], sizes = [8, 64], strides = [1, 1]} : vector<8x96xf32> to vector<8x64xf32>
    %152 = arith.addf %150, %151 : vector<8x64xf32>
    %153 = arith.negf %152 : vector<8x64xf32>
    %154 = math.exp %153 : vector<8x64xf32>
    %cst_39 = arith.constant 1.000000e+00 : f32
    %155 = vector.broadcast %cst_39 : f32 to vector<8x64xf32>
    %156 = arith.addf %155, %154 : vector<8x64xf32>
    %157 = arith.divf %155, %156 : vector<8x64xf32>
    %158 = vector.extract_strided_slice %157 {offsets = [0, 0], sizes = [8, 32], strides = [1, 1]} : vector<8x64xf32> to vector<8x32xf32>
    %159 = vector.extract_strided_slice %157 {offsets = [0, 32], sizes = [8, 32], strides = [1, 1]} : vector<8x64xf32> to vector<8x32xf32>
    %160 = vector.extract_strided_slice %148 {offsets = [0, 64], sizes = [8, 32], strides = [1, 1]} : vector<8x96xf32> to vector<8x32xf32>
    %161 = vector.extract_strided_slice %149 {offsets = [0, 64], sizes = [8, 32], strides = [1, 1]} : vector<8x96xf32> to vector<8x32xf32>
    %162 = vector.broadcast %8 : vector<1x32xf32> to vector<8x32xf32>
    %163 = arith.addf %161, %162 : vector<8x32xf32>
    %164 = arith.mulf %158, %163 : vector<8x32xf32>
    %165 = arith.addf %160, %164 : vector<8x32xf32>
    %166 = math.tanh %165 : vector<8x32xf32>
    %167 = arith.subf %142, %166 : vector<8x32xf32>
    %168 = arith.mulf %159, %167 : vector<8x32xf32>
    %169 = arith.addf %166, %168 : vector<8x32xf32>
    %170 = arith.index_cast %146 : i32 to index
    %c0_40 = arith.constant 0 : index
    %171 = vector.load %arg13[%170, %c0_40] : memref<64x32xf32, #tpu.memory_space<vmem>>, vector<8x32xf32>
    tpu.vector_store %arg13[%170, %c0_40], %169 {strides = array<i32>} : memref<64x32xf32, #tpu.memory_space<vmem>>, vector<8x32xf32>,
    %c6_i32 = arith.constant 6 : i32
    %c8_i32_41 = arith.constant 8 : i32
    %172 = arith.muli %c6_i32, %c8_i32_41 : i32
    %173 = tpu.assume_multiple %172, 8 : i32
    %174 = arith.index_cast %173 : i32 to index
    %c0_42 = arith.constant 0 : index
    %175 = vector.load %arg14[%174, %c0_42] : memref<64x96xf32, #tpu.memory_space<vmem>>, vector<8x96xf32>
    %cst_43 = arith.constant dense<0.000000e+00> : vector<8x96xf32>
    %176 = tpu.matmul %169, %7, %cst_43 {dimension_numbers = #tpu.dot_dimension_numbers<[1], [0], [0], [1], [0, 0, 1, 1], [], []>} : vector<8x32xf32>, vector<32x96xf32>, vector<8x96xf32> -> vector<8x96xf32>
    %177 = vector.extract_strided_slice %175 {offsets = [0, 0], sizes = [8, 64], strides = [1, 1]} : vector<8x96xf32> to vector<8x64xf32>
    %178 = vector.extract_strided_slice %176 {offsets = [0, 0], sizes = [8, 64], strides = [1, 1]} : vector<8x96xf32> to vector<8x64xf32>
    %179 = arith.addf %177, %178 : vector<8x64xf32>
    %180 = arith.negf %179 : vector<8x64xf32>
    %181 = math.exp %180 : vector<8x64xf32>
    %cst_44 = arith.constant 1.000000e+00 : f32
    %182 = vector.broadcast %cst_44 : f32 to vector<8x64xf32>
    %183 = arith.addf %182, %181 : vector<8x64xf32>
    %184 = arith.divf %182, %183 : vector<8x64xf32>
    %185 = vector.extract_strided_slice %184 {offsets = [0, 0], sizes = [8, 32], strides = [1, 1]} : vector<8x64xf32> to vector<8x32xf32>
    %186 = vector.extract_strided_slice %184 {offsets = [0, 32], sizes = [8, 32], strides = [1, 1]} : vector<8x64xf32> to vector<8x32xf32>
    %187 = vector.extract_strided_slice %175 {offsets = [0, 64], sizes = [8, 32], strides = [1, 1]} : vector<8x96xf32> to vector<8x32xf32>
    %188 = vector.extract_strided_slice %176 {offsets = [0, 64], sizes = [8, 32], strides = [1, 1]} : vector<8x96xf32> to vector<8x32xf32>
    %189 = vector.broadcast %8 : vector<1x32xf32> to vector<8x32xf32>
    %190 = arith.addf %188, %189 : vector<8x32xf32>
    %191 = arith.mulf %185, %190 : vector<8x32xf32>
    %192 = arith.addf %187, %191 : vector<8x32xf32>
    %193 = math.tanh %192 : vector<8x32xf32>
    %194 = arith.subf %169, %193 : vector<8x32xf32>
    %195 = arith.mulf %186, %194 : vector<8x32xf32>
    %196 = arith.addf %193, %195 : vector<8x32xf32>
    %197 = arith.index_cast %173 : i32 to index
    %c0_45 = arith.constant 0 : index
    %198 = vector.load %arg13[%197, %c0_45] : memref<64x32xf32, #tpu.memory_space<vmem>>, vector<8x32xf32>
    tpu.vector_store %arg13[%197, %c0_45], %196 {strides = array<i32>} : memref<64x32xf32, #tpu.memory_space<vmem>>, vector<8x32xf32>,
    %c7_i32 = arith.constant 7 : i32
    %c8_i32_46 = arith.constant 8 : i32
    %199 = arith.muli %c7_i32, %c8_i32_46 : i32
    %200 = tpu.assume_multiple %199, 8 : i32
    %201 = arith.index_cast %200 : i32 to index
    %c0_47 = arith.constant 0 : index
    %202 = vector.load %arg14[%201, %c0_47] : memref<64x96xf32, #tpu.memory_space<vmem>>, vector<8x96xf32>
    %cst_48 = arith.constant dense<0.000000e+00> : vector<8x96xf32>
    %203 = tpu.matmul %196, %7, %cst_48 {dimension_numbers = #tpu.dot_dimension_numbers<[1], [0], [0], [1], [0, 0, 1, 1], [], []>} : vector<8x32xf32>, vector<32x96xf32>, vector<8x96xf32> -> vector<8x96xf32>
    %204 = vector.extract_strided_slice %202 {offsets = [0, 0], sizes = [8, 64], strides = [1, 1]} : vector<8x96xf32> to vector<8x64xf32>
    %205 = vector.extract_strided_slice %203 {offsets = [0, 0], sizes = [8, 64], strides = [1, 1]} : vector<8x96xf32> to vector<8x64xf32>
    %206 = arith.addf %204, %205 : vector<8x64xf32>
    %207 = arith.negf %206 : vector<8x64xf32>
    %208 = math.exp %207 : vector<8x64xf32>
    %cst_49 = arith.constant 1.000000e+00 : f32
    %209 = vector.broadcast %cst_49 : f32 to vector<8x64xf32>
    %210 = arith.addf %209, %208 : vector<8x64xf32>
    %211 = arith.divf %209, %210 : vector<8x64xf32>
    %212 = vector.extract_strided_slice %211 {offsets = [0, 0], sizes = [8, 32], strides = [1, 1]} : vector<8x64xf32> to vector<8x32xf32>
    %213 = vector.extract_strided_slice %211 {offsets = [0, 32], sizes = [8, 32], strides = [1, 1]} : vector<8x64xf32> to vector<8x32xf32>
    %214 = vector.extract_strided_slice %202 {offsets = [0, 64], sizes = [8, 32], strides = [1, 1]} : vector<8x96xf32> to vector<8x32xf32>
    %215 = vector.extract_strided_slice %203 {offsets = [0, 64], sizes = [8, 32], strides = [1, 1]} : vector<8x96xf32> to vector<8x32xf32>
    %216 = vector.broadcast %8 : vector<1x32xf32> to vector<8x32xf32>
    %217 = arith.addf %215, %216 : vector<8x32xf32>
    %218 = arith.mulf %212, %217 : vector<8x32xf32>
    %219 = arith.addf %214, %218 : vector<8x32xf32>
    %220 = math.tanh %219 : vector<8x32xf32>
    %221 = arith.subf %196, %220 : vector<8x32xf32>
    %222 = arith.mulf %213, %221 : vector<8x32xf32>
    %223 = arith.addf %220, %222 : vector<8x32xf32>
    %224 = arith.index_cast %200 : i32 to index
    %c0_50 = arith.constant 0 : index
    %225 = vector.load %arg13[%224, %c0_50] : memref<64x32xf32, #tpu.memory_space<vmem>>, vector<8x32xf32>
    tpu.vector_store %arg13[%224, %c0_50], %223 {strides = array<i32>} : memref<64x32xf32, #tpu.memory_space<vmem>>, vector<8x32xf32>,
    %c8_i32_51 = arith.constant 8 : i32
    %c0_52 = arith.constant 0 : index
    %c0_53 = arith.constant 0 : index
    %226 = vector.load %arg13[%c0_52, %c0_53] : memref<64x32xf32, #tpu.memory_space<vmem>>, vector<64x32xf32>
    %c0_54 = arith.constant 0 : index
    %c0_55 = arith.constant 0 : index
    %227 = vector.load %arg6[%c0_54, %c0_55] : memref<32x96xf32, #tpu.memory_space<vmem>>, vector<32x96xf32>
    %cst_56 = arith.constant dense<0.000000e+00> : vector<64x96xf32>
    %228 = tpu.matmul %226, %227, %cst_56 {dimension_numbers = #tpu.dot_dimension_numbers<[1], [0], [0], [1], [0, 0, 1, 1], [], []>} : vector<64x32xf32>, vector<32x96xf32>, vector<64x96xf32> -> vector<64x96xf32>
    %c0_57 = arith.constant 0 : index
    %c0_58 = arith.constant 0 : index
    %229 = vector.load %arg8[%c0_57, %c0_58] : memref<1x96xf32, #tpu.memory_space<vmem>>, vector<1x96xf32>
    %230 = vector.broadcast %229 : vector<1x96xf32> to vector<64x96xf32>
    %231 = arith.addf %228, %230 : vector<64x96xf32>
    %c0_59 = arith.constant 0 : index
    %c0_60 = arith.constant 0 : index
    %232 = vector.load %arg14[%c0_59, %c0_60] : memref<64x96xf32, #tpu.memory_space<vmem>>, vector<64x96xf32>
    tpu.vector_store %arg14[%c0_59, %c0_60], %231 {strides = array<i32>} : memref<64x96xf32, #tpu.memory_space<vmem>>, vector<64x96xf32>,
    %c0_61 = arith.constant 0 : index
    %c0_62 = arith.constant 0 : index
    %233 = vector.load %arg7[%c0_61, %c0_62] : memref<32x96xf32, #tpu.memory_space<vmem>>, vector<32x96xf32>
    %c0_63 = arith.constant 0 : index
    %c0_64 = arith.constant 0 : index
    %234 = vector.load %arg9[%c0_63, %c0_64] : memref<1x32xf32, #tpu.memory_space<vmem>>, vector<1x32xf32>
    %cst_65 = arith.constant 0.000000e+00 : f32
    %235 = vector.broadcast %cst_65 : f32 to vector<8x32xf32>
    %c0_i32_66 = arith.constant 0 : i32
    %c8_i32_67 = arith.constant 8 : i32
    %236 = arith.muli %c0_i32_66, %c8_i32_67 : i32
    %237 = tpu.assume_multiple %236, 8 : i32
    %238 = arith.index_cast %237 : i32 to index
    %c0_68 = arith.constant 0 : index
    %239 = vector.load %arg14[%238, %c0_68] : memref<64x96xf32, #tpu.memory_space<vmem>>, vector<8x96xf32>
    %cst_69 = arith.constant dense<0.000000e+00> : vector<8x96xf32>
    %240 = tpu.matmul %235, %233, %cst_69 {dimension_numbers = #tpu.dot_dimension_numbers<[1], [0], [0], [1], [0, 0, 1, 1], [], []>} : vector<8x32xf32>, vector<32x96xf32>, vector<8x96xf32> -> vector<8x96xf32>
    %241 = vector.extract_strided_slice %239 {offsets = [0, 0], sizes = [8, 64], strides = [1, 1]} : vector<8x96xf32> to vector<8x64xf32>
    %242 = vector.extract_strided_slice %240 {offsets = [0, 0], sizes = [8, 64], strides = [1, 1]} : vector<8x96xf32> to vector<8x64xf32>
    %243 = arith.addf %241, %242 : vector<8x64xf32>
    %244 = arith.negf %243 : vector<8x64xf32>
    %245 = math.exp %244 : vector<8x64xf32>
    %cst_70 = arith.constant 1.000000e+00 : f32
    %246 = vector.broadcast %cst_70 : f32 to vector<8x64xf32>
    %247 = arith.addf %246, %245 : vector<8x64xf32>
    %248 = arith.divf %246, %247 : vector<8x64xf32>
    %249 = vector.extract_strided_slice %248 {offsets = [0, 0], sizes = [8, 32], strides = [1, 1]} : vector<8x64xf32> to vector<8x32xf32>
    %250 = vector.extract_strided_slice %248 {offsets = [0, 32], sizes = [8, 32], strides = [1, 1]} : vector<8x64xf32> to vector<8x32xf32>
    %251 = vector.extract_strided_slice %239 {offsets = [0, 64], sizes = [8, 32], strides = [1, 1]} : vector<8x96xf32> to vector<8x32xf32>
    %252 = vector.extract_strided_slice %240 {offsets = [0, 64], sizes = [8, 32], strides = [1, 1]} : vector<8x96xf32> to vector<8x32xf32>
    %253 = vector.broadcast %234 : vector<1x32xf32> to vector<8x32xf32>
    %254 = arith.addf %252, %253 : vector<8x32xf32>
    %255 = arith.mulf %249, %254 : vector<8x32xf32>
    %256 = arith.addf %251, %255 : vector<8x32xf32>
    %257 = math.tanh %256 : vector<8x32xf32>
    %258 = arith.subf %235, %257 : vector<8x32xf32>
    %259 = arith.mulf %250, %258 : vector<8x32xf32>
    %260 = arith.addf %257, %259 : vector<8x32xf32>
    %c1_i32_71 = arith.constant 1 : i32
    %c8_i32_72 = arith.constant 8 : i32
    %261 = arith.muli %c1_i32_71, %c8_i32_72 : i32
    %262 = tpu.assume_multiple %261, 8 : i32
    %263 = arith.index_cast %262 : i32 to index
    %c0_73 = arith.constant 0 : index
    %264 = vector.load %arg14[%263, %c0_73] : memref<64x96xf32, #tpu.memory_space<vmem>>, vector<8x96xf32>
    %cst_74 = arith.constant dense<0.000000e+00> : vector<8x96xf32>
    %265 = tpu.matmul %260, %233, %cst_74 {dimension_numbers = #tpu.dot_dimension_numbers<[1], [0], [0], [1], [0, 0, 1, 1], [], []>} : vector<8x32xf32>, vector<32x96xf32>, vector<8x96xf32> -> vector<8x96xf32>
    %266 = vector.extract_strided_slice %264 {offsets = [0, 0], sizes = [8, 64], strides = [1, 1]} : vector<8x96xf32> to vector<8x64xf32>
    %267 = vector.extract_strided_slice %265 {offsets = [0, 0], sizes = [8, 64], strides = [1, 1]} : vector<8x96xf32> to vector<8x64xf32>
    %268 = arith.addf %266, %267 : vector<8x64xf32>
    %269 = arith.negf %268 : vector<8x64xf32>
    %270 = math.exp %269 : vector<8x64xf32>
    %cst_75 = arith.constant 1.000000e+00 : f32
    %271 = vector.broadcast %cst_75 : f32 to vector<8x64xf32>
    %272 = arith.addf %271, %270 : vector<8x64xf32>
    %273 = arith.divf %271, %272 : vector<8x64xf32>
    %274 = vector.extract_strided_slice %273 {offsets = [0, 0], sizes = [8, 32], strides = [1, 1]} : vector<8x64xf32> to vector<8x32xf32>
    %275 = vector.extract_strided_slice %273 {offsets = [0, 32], sizes = [8, 32], strides = [1, 1]} : vector<8x64xf32> to vector<8x32xf32>
    %276 = vector.extract_strided_slice %264 {offsets = [0, 64], sizes = [8, 32], strides = [1, 1]} : vector<8x96xf32> to vector<8x32xf32>
    %277 = vector.extract_strided_slice %265 {offsets = [0, 64], sizes = [8, 32], strides = [1, 1]} : vector<8x96xf32> to vector<8x32xf32>
    %278 = vector.broadcast %234 : vector<1x32xf32> to vector<8x32xf32>
    %279 = arith.addf %277, %278 : vector<8x32xf32>
    %280 = arith.mulf %274, %279 : vector<8x32xf32>
    %281 = arith.addf %276, %280 : vector<8x32xf32>
    %282 = math.tanh %281 : vector<8x32xf32>
    %283 = arith.subf %260, %282 : vector<8x32xf32>
    %284 = arith.mulf %275, %283 : vector<8x32xf32>
    %285 = arith.addf %282, %284 : vector<8x32xf32>
    %c2_i32_76 = arith.constant 2 : i32
    %c8_i32_77 = arith.constant 8 : i32
    %286 = arith.muli %c2_i32_76, %c8_i32_77 : i32
    %287 = tpu.assume_multiple %286, 8 : i32
    %288 = arith.index_cast %287 : i32 to index
    %c0_78 = arith.constant 0 : index
    %289 = vector.load %arg14[%288, %c0_78] : memref<64x96xf32, #tpu.memory_space<vmem>>, vector<8x96xf32>
    %cst_79 = arith.constant dense<0.000000e+00> : vector<8x96xf32>
    %290 = tpu.matmul %285, %233, %cst_79 {dimension_numbers = #tpu.dot_dimension_numbers<[1], [0], [0], [1], [0, 0, 1, 1], [], []>} : vector<8x32xf32>, vector<32x96xf32>, vector<8x96xf32> -> vector<8x96xf32>
    %291 = vector.extract_strided_slice %289 {offsets = [0, 0], sizes = [8, 64], strides = [1, 1]} : vector<8x96xf32> to vector<8x64xf32>
    %292 = vector.extract_strided_slice %290 {offsets = [0, 0], sizes = [8, 64], strides = [1, 1]} : vector<8x96xf32> to vector<8x64xf32>
    %293 = arith.addf %291, %292 : vector<8x64xf32>
    %294 = arith.negf %293 : vector<8x64xf32>
    %295 = math.exp %294 : vector<8x64xf32>
    %cst_80 = arith.constant 1.000000e+00 : f32
    %296 = vector.broadcast %cst_80 : f32 to vector<8x64xf32>
    %297 = arith.addf %296, %295 : vector<8x64xf32>
    %298 = arith.divf %296, %297 : vector<8x64xf32>
    %299 = vector.extract_strided_slice %298 {offsets = [0, 0], sizes = [8, 32], strides = [1, 1]} : vector<8x64xf32> to vector<8x32xf32>
    %300 = vector.extract_strided_slice %298 {offsets = [0, 32], sizes = [8, 32], strides = [1, 1]} : vector<8x64xf32> to vector<8x32xf32>
    %301 = vector.extract_strided_slice %289 {offsets = [0, 64], sizes = [8, 32], strides = [1, 1]} : vector<8x96xf32> to vector<8x32xf32>
    %302 = vector.extract_strided_slice %290 {offsets = [0, 64], sizes = [8, 32], strides = [1, 1]} : vector<8x96xf32> to vector<8x32xf32>
    %303 = vector.broadcast %234 : vector<1x32xf32> to vector<8x32xf32>
    %304 = arith.addf %302, %303 : vector<8x32xf32>
    %305 = arith.mulf %299, %304 : vector<8x32xf32>
    %306 = arith.addf %301, %305 : vector<8x32xf32>
    %307 = math.tanh %306 : vector<8x32xf32>
    %308 = arith.subf %285, %307 : vector<8x32xf32>
    %309 = arith.mulf %300, %308 : vector<8x32xf32>
    %310 = arith.addf %307, %309 : vector<8x32xf32>
    %c3_i32_81 = arith.constant 3 : i32
    %c8_i32_82 = arith.constant 8 : i32
    %311 = arith.muli %c3_i32_81, %c8_i32_82 : i32
    %312 = tpu.assume_multiple %311, 8 : i32
    %313 = arith.index_cast %312 : i32 to index
    %c0_83 = arith.constant 0 : index
    %314 = vector.load %arg14[%313, %c0_83] : memref<64x96xf32, #tpu.memory_space<vmem>>, vector<8x96xf32>
    %cst_84 = arith.constant dense<0.000000e+00> : vector<8x96xf32>
    %315 = tpu.matmul %310, %233, %cst_84 {dimension_numbers = #tpu.dot_dimension_numbers<[1], [0], [0], [1], [0, 0, 1, 1], [], []>} : vector<8x32xf32>, vector<32x96xf32>, vector<8x96xf32> -> vector<8x96xf32>
    %316 = vector.extract_strided_slice %314 {offsets = [0, 0], sizes = [8, 64], strides = [1, 1]} : vector<8x96xf32> to vector<8x64xf32>
    %317 = vector.extract_strided_slice %315 {offsets = [0, 0], sizes = [8, 64], strides = [1, 1]} : vector<8x96xf32> to vector<8x64xf32>
    %318 = arith.addf %316, %317 : vector<8x64xf32>
    %319 = arith.negf %318 : vector<8x64xf32>
    %320 = math.exp %319 : vector<8x64xf32>
    %cst_85 = arith.constant 1.000000e+00 : f32
    %321 = vector.broadcast %cst_85 : f32 to vector<8x64xf32>
    %322 = arith.addf %321, %320 : vector<8x64xf32>
    %323 = arith.divf %321, %322 : vector<8x64xf32>
    %324 = vector.extract_strided_slice %323 {offsets = [0, 0], sizes = [8, 32], strides = [1, 1]} : vector<8x64xf32> to vector<8x32xf32>
    %325 = vector.extract_strided_slice %323 {offsets = [0, 32], sizes = [8, 32], strides = [1, 1]} : vector<8x64xf32> to vector<8x32xf32>
    %326 = vector.extract_strided_slice %314 {offsets = [0, 64], sizes = [8, 32], strides = [1, 1]} : vector<8x96xf32> to vector<8x32xf32>
    %327 = vector.extract_strided_slice %315 {offsets = [0, 64], sizes = [8, 32], strides = [1, 1]} : vector<8x96xf32> to vector<8x32xf32>
    %328 = vector.broadcast %234 : vector<1x32xf32> to vector<8x32xf32>
    %329 = arith.addf %327, %328 : vector<8x32xf32>
    %330 = arith.mulf %324, %329 : vector<8x32xf32>
    %331 = arith.addf %326, %330 : vector<8x32xf32>
    %332 = math.tanh %331 : vector<8x32xf32>
    %333 = arith.subf %310, %332 : vector<8x32xf32>
    %334 = arith.mulf %325, %333 : vector<8x32xf32>
    %335 = arith.addf %332, %334 : vector<8x32xf32>
    %c4_i32_86 = arith.constant 4 : i32
    %c8_i32_87 = arith.constant 8 : i32
    %336 = arith.muli %c4_i32_86, %c8_i32_87 : i32
    %337 = tpu.assume_multiple %336, 8 : i32
    %338 = arith.index_cast %337 : i32 to index
    %c0_88 = arith.constant 0 : index
    %339 = vector.load %arg14[%338, %c0_88] : memref<64x96xf32, #tpu.memory_space<vmem>>, vector<8x96xf32>
    %cst_89 = arith.constant dense<0.000000e+00> : vector<8x96xf32>
    %340 = tpu.matmul %335, %233, %cst_89 {dimension_numbers = #tpu.dot_dimension_numbers<[1], [0], [0], [1], [0, 0, 1, 1], [], []>} : vector<8x32xf32>, vector<32x96xf32>, vector<8x96xf32> -> vector<8x96xf32>
    %341 = vector.extract_strided_slice %339 {offsets = [0, 0], sizes = [8, 64], strides = [1, 1]} : vector<8x96xf32> to vector<8x64xf32>
    %342 = vector.extract_strided_slice %340 {offsets = [0, 0], sizes = [8, 64], strides = [1, 1]} : vector<8x96xf32> to vector<8x64xf32>
    %343 = arith.addf %341, %342 : vector<8x64xf32>
    %344 = arith.negf %343 : vector<8x64xf32>
    %345 = math.exp %344 : vector<8x64xf32>
    %cst_90 = arith.constant 1.000000e+00 : f32
    %346 = vector.broadcast %cst_90 : f32 to vector<8x64xf32>
    %347 = arith.addf %346, %345 : vector<8x64xf32>
    %348 = arith.divf %346, %347 : vector<8x64xf32>
    %349 = vector.extract_strided_slice %348 {offsets = [0, 0], sizes = [8, 32], strides = [1, 1]} : vector<8x64xf32> to vector<8x32xf32>
    %350 = vector.extract_strided_slice %348 {offsets = [0, 32], sizes = [8, 32], strides = [1, 1]} : vector<8x64xf32> to vector<8x32xf32>
    %351 = vector.extract_strided_slice %339 {offsets = [0, 64], sizes = [8, 32], strides = [1, 1]} : vector<8x96xf32> to vector<8x32xf32>
    %352 = vector.extract_strided_slice %340 {offsets = [0, 64], sizes = [8, 32], strides = [1, 1]} : vector<8x96xf32> to vector<8x32xf32>
    %353 = vector.broadcast %234 : vector<1x32xf32> to vector<8x32xf32>
    %354 = arith.addf %352, %353 : vector<8x32xf32>
    %355 = arith.mulf %349, %354 : vector<8x32xf32>
    %356 = arith.addf %351, %355 : vector<8x32xf32>
    %357 = math.tanh %356 : vector<8x32xf32>
    %358 = arith.subf %335, %357 : vector<8x32xf32>
    %359 = arith.mulf %350, %358 : vector<8x32xf32>
    %360 = arith.addf %357, %359 : vector<8x32xf32>
    %c5_i32_91 = arith.constant 5 : i32
    %c8_i32_92 = arith.constant 8 : i32
    %361 = arith.muli %c5_i32_91, %c8_i32_92 : i32
    %362 = tpu.assume_multiple %361, 8 : i32
    %363 = arith.index_cast %362 : i32 to index
    %c0_93 = arith.constant 0 : index
    %364 = vector.load %arg14[%363, %c0_93] : memref<64x96xf32, #tpu.memory_space<vmem>>, vector<8x96xf32>
    %cst_94 = arith.constant dense<0.000000e+00> : vector<8x96xf32>
    %365 = tpu.matmul %360, %233, %cst_94 {dimension_numbers = #tpu.dot_dimension_numbers<[1], [0], [0], [1], [0, 0, 1, 1], [], []>} : vector<8x32xf32>, vector<32x96xf32>, vector<8x96xf32> -> vector<8x96xf32>
    %366 = vector.extract_strided_slice %364 {offsets = [0, 0], sizes = [8, 64], strides = [1, 1]} : vector<8x96xf32> to vector<8x64xf32>
    %367 = vector.extract_strided_slice %365 {offsets = [0, 0], sizes = [8, 64], strides = [1, 1]} : vector<8x96xf32> to vector<8x64xf32>
    %368 = arith.addf %366, %367 : vector<8x64xf32>
    %369 = arith.negf %368 : vector<8x64xf32>
    %370 = math.exp %369 : vector<8x64xf32>
    %cst_95 = arith.constant 1.000000e+00 : f32
    %371 = vector.broadcast %cst_95 : f32 to vector<8x64xf32>
    %372 = arith.addf %371, %370 : vector<8x64xf32>
    %373 = arith.divf %371, %372 : vector<8x64xf32>
    %374 = vector.extract_strided_slice %373 {offsets = [0, 0], sizes = [8, 32], strides = [1, 1]} : vector<8x64xf32> to vector<8x32xf32>
    %375 = vector.extract_strided_slice %373 {offsets = [0, 32], sizes = [8, 32], strides = [1, 1]} : vector<8x64xf32> to vector<8x32xf32>
    %376 = vector.extract_strided_slice %364 {offsets = [0, 64], sizes = [8, 32], strides = [1, 1]} : vector<8x96xf32> to vector<8x32xf32>
    %377 = vector.extract_strided_slice %365 {offsets = [0, 64], sizes = [8, 32], strides = [1, 1]} : vector<8x96xf32> to vector<8x32xf32>
    %378 = vector.broadcast %234 : vector<1x32xf32> to vector<8x32xf32>
    %379 = arith.addf %377, %378 : vector<8x32xf32>
    %380 = arith.mulf %374, %379 : vector<8x32xf32>
    %381 = arith.addf %376, %380 : vector<8x32xf32>
    %382 = math.tanh %381 : vector<8x32xf32>
    %383 = arith.subf %360, %382 : vector<8x32xf32>
    %384 = arith.mulf %375, %383 : vector<8x32xf32>
    %385 = arith.addf %382, %384 : vector<8x32xf32>
    %c6_i32_96 = arith.constant 6 : i32
    %c8_i32_97 = arith.constant 8 : i32
    %386 = arith.muli %c6_i32_96, %c8_i32_97 : i32
    %387 = tpu.assume_multiple %386, 8 : i32
    %388 = arith.index_cast %387 : i32 to index
    %c0_98 = arith.constant 0 : index
    %389 = vector.load %arg14[%388, %c0_98] : memref<64x96xf32, #tpu.memory_space<vmem>>, vector<8x96xf32>
    %cst_99 = arith.constant dense<0.000000e+00> : vector<8x96xf32>
    %390 = tpu.matmul %385, %233, %cst_99 {dimension_numbers = #tpu.dot_dimension_numbers<[1], [0], [0], [1], [0, 0, 1, 1], [], []>} : vector<8x32xf32>, vector<32x96xf32>, vector<8x96xf32> -> vector<8x96xf32>
    %391 = vector.extract_strided_slice %389 {offsets = [0, 0], sizes = [8, 64], strides = [1, 1]} : vector<8x96xf32> to vector<8x64xf32>
    %392 = vector.extract_strided_slice %390 {offsets = [0, 0], sizes = [8, 64], strides = [1, 1]} : vector<8x96xf32> to vector<8x64xf32>
    %393 = arith.addf %391, %392 : vector<8x64xf32>
    %394 = arith.negf %393 : vector<8x64xf32>
    %395 = math.exp %394 : vector<8x64xf32>
    %cst_100 = arith.constant 1.000000e+00 : f32
    %396 = vector.broadcast %cst_100 : f32 to vector<8x64xf32>
    %397 = arith.addf %396, %395 : vector<8x64xf32>
    %398 = arith.divf %396, %397 : vector<8x64xf32>
    %399 = vector.extract_strided_slice %398 {offsets = [0, 0], sizes = [8, 32], strides = [1, 1]} : vector<8x64xf32> to vector<8x32xf32>
    %400 = vector.extract_strided_slice %398 {offsets = [0, 32], sizes = [8, 32], strides = [1, 1]} : vector<8x64xf32> to vector<8x32xf32>
    %401 = vector.extract_strided_slice %389 {offsets = [0, 64], sizes = [8, 32], strides = [1, 1]} : vector<8x96xf32> to vector<8x32xf32>
    %402 = vector.extract_strided_slice %390 {offsets = [0, 64], sizes = [8, 32], strides = [1, 1]} : vector<8x96xf32> to vector<8x32xf32>
    %403 = vector.broadcast %234 : vector<1x32xf32> to vector<8x32xf32>
    %404 = arith.addf %402, %403 : vector<8x32xf32>
    %405 = arith.mulf %399, %404 : vector<8x32xf32>
    %406 = arith.addf %401, %405 : vector<8x32xf32>
    %407 = math.tanh %406 : vector<8x32xf32>
    %408 = arith.subf %385, %407 : vector<8x32xf32>
    %409 = arith.mulf %400, %408 : vector<8x32xf32>
    %410 = arith.addf %407, %409 : vector<8x32xf32>
    %c7_i32_101 = arith.constant 7 : i32
    %c8_i32_102 = arith.constant 8 : i32
    %411 = arith.muli %c7_i32_101, %c8_i32_102 : i32
    %412 = tpu.assume_multiple %411, 8 : i32
    %413 = arith.index_cast %412 : i32 to index
    %c0_103 = arith.constant 0 : index
    %414 = vector.load %arg14[%413, %c0_103] : memref<64x96xf32, #tpu.memory_space<vmem>>, vector<8x96xf32>
    %cst_104 = arith.constant dense<0.000000e+00> : vector<8x96xf32>
    %415 = tpu.matmul %410, %233, %cst_104 {dimension_numbers = #tpu.dot_dimension_numbers<[1], [0], [0], [1], [0, 0, 1, 1], [], []>} : vector<8x32xf32>, vector<32x96xf32>, vector<8x96xf32> -> vector<8x96xf32>
    %416 = vector.extract_strided_slice %414 {offsets = [0, 0], sizes = [8, 64], strides = [1, 1]} : vector<8x96xf32> to vector<8x64xf32>
    %417 = vector.extract_strided_slice %415 {offsets = [0, 0], sizes = [8, 64], strides = [1, 1]} : vector<8x96xf32> to vector<8x64xf32>
    %418 = arith.addf %416, %417 : vector<8x64xf32>
    %419 = arith.negf %418 : vector<8x64xf32>
    %420 = math.exp %419 : vector<8x64xf32>
    %cst_105 = arith.constant 1.000000e+00 : f32
    %421 = vector.broadcast %cst_105 : f32 to vector<8x64xf32>
    %422 = arith.addf %421, %420 : vector<8x64xf32>
    %423 = arith.divf %421, %422 : vector<8x64xf32>
    %424 = vector.extract_strided_slice %423 {offsets = [0, 0], sizes = [8, 32], strides = [1, 1]} : vector<8x64xf32> to vector<8x32xf32>
    %425 = vector.extract_strided_slice %423 {offsets = [0, 32], sizes = [8, 32], strides = [1, 1]} : vector<8x64xf32> to vector<8x32xf32>
    %426 = vector.extract_strided_slice %414 {offsets = [0, 64], sizes = [8, 32], strides = [1, 1]} : vector<8x96xf32> to vector<8x32xf32>
    %427 = vector.extract_strided_slice %415 {offsets = [0, 64], sizes = [8, 32], strides = [1, 1]} : vector<8x96xf32> to vector<8x32xf32>
    %428 = vector.broadcast %234 : vector<1x32xf32> to vector<8x32xf32>
    %429 = arith.addf %427, %428 : vector<8x32xf32>
    %430 = arith.mulf %424, %429 : vector<8x32xf32>
    %431 = arith.addf %426, %430 : vector<8x32xf32>
    %432 = math.tanh %431 : vector<8x32xf32>
    %433 = arith.subf %410, %432 : vector<8x32xf32>
    %434 = arith.mulf %425, %433 : vector<8x32xf32>
    %435 = arith.addf %432, %434 : vector<8x32xf32>
    %c8_i32_106 = arith.constant 8 : i32
    %c0_107 = arith.constant 0 : index
    %c0_108 = arith.constant 0 : index
    %436 = vector.load %arg10[%c0_107, %c0_108] : memref<32x10xf32, #tpu.memory_space<vmem>>, vector<32x10xf32>
    %cst_109 = arith.constant dense<0.000000e+00> : vector<8x10xf32>
    %437 = tpu.matmul %435, %436, %cst_109 {dimension_numbers = #tpu.dot_dimension_numbers<[1], [0], [0], [1], [0, 0, 1, 1], [], []>} : vector<8x32xf32>, vector<32x10xf32>, vector<8x10xf32> -> vector<8x10xf32>
    %c0_110 = arith.constant 0 : index
    %c0_111 = arith.constant 0 : index
    %438 = vector.load %arg11[%c0_110, %c0_111] : memref<1x10xf32, #tpu.memory_space<vmem>>, vector<1x10xf32>
    %439 = vector.broadcast %438 : vector<1x10xf32> to vector<8x10xf32>
    %440 = arith.addf %437, %439 : vector<8x10xf32>
    %cst_112 = arith.constant dense<0xFF800000> : vector<8xf32>
    %441 = vector.multi_reduction <maximumf>, %440, %cst_112 [1] : vector<8x10xf32> to vector<8xf32>
    %442 = vector.shape_cast %441 : vector<8xf32> to vector<8x1xf32>
    %443 = vector.broadcast %442 : vector<8x1xf32> to vector<8x10xf32>
    %444 = arith.subf %440, %443 : vector<8x10xf32>
    %445 = math.exp %444 : vector<8x10xf32>
    %cst_113 = arith.constant dense<0.000000e+00> : vector<8xf32>
    %446 = vector.multi_reduction <add>, %445, %cst_113 [1] : vector<8x10xf32> to vector<8xf32>
    %447 = vector.shape_cast %446 : vector<8xf32> to vector<8x1xf32>
    %448 = math.log %447 : vector<8x1xf32>
    %449 = arith.addf %448, %442 : vector<8x1xf32>
    %450 = vector.broadcast %449 : vector<8x1xf32> to vector<8x10xf32>
    %451 = arith.subf %440, %450 : vector<8x10xf32>
    %c0_114 = arith.constant 0 : index
    %c0_115 = arith.constant 0 : index
    %452 = vector.load %arg12[%c0_114, %c0_115] : memref<8x10xf32, #tpu.memory_space<vmem>>, vector<8x10xf32>
    tpu.vector_store %arg12[%c0_114, %c0_115], %451 {strides = array<i32>} : memref<8x10xf32, #tpu.memory_space<vmem>>, vector<8x10xf32>,
    return
  }
  func.func @transform_0(%arg0: i32) -> (i32, i32) {
    %c0_i32 = arith.constant 0 : i32
    %c0_i32_0 = arith.constant 0 : i32
    %c0_i32_1 = arith.constant 0 : i32
    return %c0_i32, %c0_i32_0 : i32, i32
  }
  func.func @transform_1(%arg0: i32) -> (i32, i32) {
    %c0_i32 = arith.constant 0 : i32
    %c0_i32_0 = arith.constant 0 : i32
    %c0_i32_1 = arith.constant 0 : i32
    return %c0_i32, %c0_i32_0 : i32, i32
  }
  func.func @transform_2(%arg0: i32) -> (i32, i32) {
    %c0_i32 = arith.constant 0 : i32
    %c0_i32_0 = arith.constant 0 : i32
    %c0_i32_1 = arith.constant 0 : i32
    return %c0_i32, %c0_i32_0 : i32, i32
  }
  func.func @transform_3(%arg0: i32) -> (i32, i32) {
    %c0_i32 = arith.constant 0 : i32
    %c0_i32_0 = arith.constant 0 : i32
    %c0_i32_1 = arith.constant 0 : i32
    return %c0_i32, %c0_i32_0 : i32, i32
  }
  func.func @transform_4(%arg0: i32) -> (i32, i32) {
    %c0_i32 = arith.constant 0 : i32
    %c0_i32_0 = arith.constant 0 : i32
    %c0_i32_1 = arith.constant 0 : i32
    return %c0_i32, %c0_i32_0 : i32, i32
  }
  func.func @transform_5(%arg0: i32) -> (i32, i32) {
    %c0_i32 = arith.constant 0 : i32
    %c0_i32_0 = arith.constant 0 : i32
    %c0_i32_1 = arith.constant 0 : i32
    return %c0_i32, %c0_i32_0 : i32, i32
  }
  func.func @transform_6(%arg0: i32) -> (i32, i32) {
    %c0_i32 = arith.constant 0 : i32
    %c0_i32_0 = arith.constant 0 : i32
    %c0_i32_1 = arith.constant 0 : i32
    return %c0_i32, %c0_i32_0 : i32, i32
  }
  func.func @transform_7(%arg0: i32) -> (i32, i32) {
    %c0_i32 = arith.constant 0 : i32
    %c0_i32_0 = arith.constant 0 : i32
    %c0_i32_1 = arith.constant 0 : i32
    return %c0_i32, %c0_i32_0 : i32, i32
  }
  func.func @transform_8(%arg0: i32) -> (i32, i32) {
    %c0_i32 = arith.constant 0 : i32
    %c0_i32_0 = arith.constant 0 : i32
    %c0_i32_1 = arith.constant 0 : i32
    return %c0_i32, %c0_i32_0 : i32, i32
  }
  func.func @transform_9(%arg0: i32) -> (i32, i32) {
    %c0_i32 = arith.constant 0 : i32
    %c0_i32_0 = arith.constant 0 : i32
    %c0_i32_1 = arith.constant 0 : i32
    return %c0_i32, %c0_i32_0 : i32, i32
  }
  func.func @transform_10(%arg0: i32) -> (i32, i32) {
    %c0_i32 = arith.constant 0 : i32
    %c0_i32_0 = arith.constant 0 : i32
    %c0_i32_1 = arith.constant 0 : i32
    return %c0_i32, %c0_i32_0 : i32, i32
  }
  func.func @transform_11(%arg0: i32) -> (i32, i32) {
    %c0_i32 = arith.constant 0 : i32
    %c0_i32_0 = arith.constant 0 : i32
    %c0_i32_1 = arith.constant 0 : i32
    return %c0_i32, %c0_i32_0 : i32, i32
  }
}

</mosaic_0001>

<llo_original>
// kernel: tpu_custom_call.1
$region0: #{tpu_custom_call.1}
  #allocation0 [shape = 'u32[]', space=smem, size = 0x4, offset = 0x4, fixed_abs, tag = 'smem constant byte address 0x4 - core index']
  #allocation1 [shape = 'u32[144,128]{1,0:T(1,128)}', space=vmem, size = 0x12000, scoped, tag = 'internal scratch']
  #allocation2 [shape = 'f32[64,32]{1,0:T(8,128)}', space=vmem, size = 0x8000, scoped, tag = 'scratch operand']
  #allocation3 [shape = 'f32[64,96]{1,0:T(8,128)}', space=vmem, size = 0x8000, scoped, tag = 'scratch operand']
  %s0 = inlined_call_operand.vmem [shape: f32[64,16], index: 0, kind: input, shape index: {}]
  %s1 = inlined_call_operand.vmem [shape: f32[16,96], index: 1, kind: input, shape index: {}]
  %s2 = inlined_call_operand.vmem [shape: f32[32,96], index: 2, kind: input, shape index: {}]
  %s3 = inlined_call_operand.hbm [shape: f32[1,96], index: 3, kind: input, shape index: {}]
  %s4 = inlined_call_operand.hbm [shape: f32[1,32], index: 4, kind: input, shape index: {}]
  %s5 = inlined_call_operand.vmem [shape: f32[32,96], index: 5, kind: input, shape index: {}]
  %s6 = inlined_call_operand.vmem [shape: f32[32,96], index: 6, kind: input, shape index: {}]
  %s7 = inlined_call_operand.hbm [shape: f32[1,96], index: 7, kind: input, shape index: {}]
  %s8 = inlined_call_operand.hbm [shape: f32[1,32], index: 8, kind: input, shape index: {}]
  %s9 = inlined_call_operand.vmem [shape: f32[32,10], index: 9, kind: input, shape index: {}]
  %s10 = inlined_call_operand.vmem [shape: f32[1,10], index: 10, kind: input, shape index: {}]
  %s11 = inlined_call_operand.hbm [shape: f32[8,10], index: 11, kind: output, shape index: {}]
  %s12 = sld [smem:[#allocation0]]
  $region70: #{tpu_custom_call.1} parent=0
    _
  %s14 = ssub.s32 1, %s12
  %s15 = scalar_select 0, %s14, %s12
  $region1: #{tpu_custom_call.1} parent=0
    #allocation4 [shape = 'u8[512]{0}', space=vmem, size = 0x400, scoped, tag = 'input window, operand 3, single buffered']
    #allocation5 [shape = 's32[1]{0}', space=sflag, size = 0x4, scoped, tag = 'scoped memory for tpu_custom_call.1']
    #allocation6 [shape = 's32[1]{0}', space=sflag, size = 0x4, scoped, tag = 'scoped memory for tpu_custom_call.1']
    #allocation7 [shape = 'u8[512]{0}', space=vmem, size = 0x400, scoped, tag = 'input window, operand 4, single buffered']
    #allocation8 [shape = 's32[1]{0}', space=sflag, size = 0x4, scoped, tag = 'scoped memory for tpu_custom_call.1']
    #allocation9 [shape = 'u8[512]{0}', space=vmem, size = 0x400, scoped, tag = 'input window, operand 7, single buffered']
    #allocation10 [shape = 'u8[512]{0}', space=vmem, size = 0x400, scoped, tag = 'input window, operand 8, single buffered']
    #allocation11 [shape = 's32[1]{0}', space=sflag, size = 0x4, scoped, tag = 'scoped memory for tpu_custom_call.1']
    #allocation12 [shape = 'u8[4096]{0}', space=vmem, size = 0x1000, scoped, tag = 'output window, operand 0, single buffered']
    %16 = vsyncpa [#allocation5], 0
    %17 = vsyncpa [#allocation8], 0
    %18 = vsyncpa [#allocation11], 0
    %19 = vsyncpa [#allocation6], 0
    // Predicated region
    $region2: #{tpu_custom_call.1} parent=1 // pred_check
      _
    $region3: #{tpu_custom_call.1} parent=1 // pred_check_branch
      %21 = sbr.rel (0) target = $region5
    $region4: #{tpu_custom_call.1} parent=1 // pred_region
      _
    $region5: #{tpu_custom_call.1} parent=1 // pred_fallthru
      _
    // Predicated region
    $region6: #{tpu_custom_call.1} parent=1 // pred_check
      _
    $region7: #{tpu_custom_call.1} parent=1 // pred_check_branch
      %23 = sbr.rel (0) target = $region9
    $region8: #{tpu_custom_call.1} parent=1 // pred_region
      _
    $region9: #{tpu_custom_call.1} parent=1 // pred_fallthru
      _
    // Predicated region
    $region10: #{tpu_custom_call.1} parent=1 // pred_check
      _
    $region11: #{tpu_custom_call.1} parent=1 // pred_check_branch
      %25 = sbr.rel (0) target = $region13
    $region12: #{tpu_custom_call.1} parent=1 // pred_region
      _
    $region13: #{tpu_custom_call.1} parent=1 // pred_fallthru
      _
    // Predicated region
    $region14: #{tpu_custom_call.1} parent=1 // pred_check
      _
    $region15: #{tpu_custom_call.1} parent=1 // pred_check_branch
      %27 = sbr.rel (0) target = $region17
    $region16: #{tpu_custom_call.1} parent=1 // pred_region
      %s29 = ssub.s32 16, 16
      %30 = vsyncadd [#allocation5], %s29
      %s32 = sshll.u32 [#allocation4], 4
      %s33 = int_to_ptr.vmem [resolvable:$true] %s32
      %35 = dma.hbm_to_vmem [thread:$0]  %s3, 16, %s33, [#allocation5]
    $region17: #{tpu_custom_call.1} parent=1 // pred_fallthru
      _
    // Predicated region
    $region18: #{tpu_custom_call.1} parent=1 // pred_check
      _
    $region19: #{tpu_custom_call.1} parent=1 // pred_check_branch
      %37 = sbr.rel (0) target = $region21
    $region20: #{tpu_custom_call.1} parent=1 // pred_region
      %s39 = ssub.s32 16, 16
      %40 = vsyncadd [#allocation8], %s39
      %s42 = sshll.u32 [#allocation7], 4
      %s43 = int_to_ptr.vmem [resolvable:$true] %s42
      %45 = dma.hbm_to_vmem [thread:$0]  %s4, 16, %s43, [#allocation8]
    $region21: #{tpu_custom_call.1} parent=1 // pred_fallthru
      _
    // Predicated region
    $region22: #{tpu_custom_call.1} parent=1 // pred_check
      _
    $region23: #{tpu_custom_call.1} parent=1 // pred_check_branch
      %47 = sbr.rel (0) target = $region25
    $region24: #{tpu_custom_call.1} parent=1 // pred_region
      _
    $region25: #{tpu_custom_call.1} parent=1 // pred_fallthru
      _
    // Predicated region
    $region26: #{tpu_custom_call.1} parent=1 // pred_check
      _
    $region27: #{tpu_custom_call.1} parent=1 // pred_check_branch
      %49 = sbr.rel (0) target = $region29
    $region28: #{tpu_custom_call.1} parent=1 // pred_region
      _
    $region29: #{tpu_custom_call.1} parent=1 // pred_fallthru
      _
    // Predicated region
    $region30: #{tpu_custom_call.1} parent=1 // pred_check
      _
    $region31: #{tpu_custom_call.1} parent=1 // pred_check_branch
      %51 = sbr.rel (0) target = $region33
    $region32: #{tpu_custom_call.1} parent=1 // pred_region
      %s53 = ssub.s32 16, 16
      %54 = vsyncadd [#allocation8], %s53
      %s56 = sshll.u32 [#allocation9], 4
      %s57 = int_to_ptr.vmem [resolvable:$true] %s56
      %59 = dma.hbm_to_vmem [thread:$0]  %s7, 16, %s57, [#allocation8]
    $region33: #{tpu_custom_call.1} parent=1 // pred_fallthru
      _
    // Predicated region
    $region34: #{tpu_custom_call.1} parent=1 // pred_check
      _
    $region35: #{tpu_custom_call.1} parent=1 // pred_check_branch
      %61 = sbr.rel (0) target = $region37
    $region36: #{tpu_custom_call.1} parent=1 // pred_region
      %s63 = ssub.s32 16, 16
      %64 = vsyncadd [#allocation11], %s63
      %s66 = sshll.u32 [#allocation10], 4
      %s67 = int_to_ptr.vmem [resolvable:$true] %s66
      %69 = dma.hbm_to_vmem [thread:$0]  %s8, 16, %s67, [#allocation11]
    $region37: #{tpu_custom_call.1} parent=1 // pred_fallthru
      _
    // Predicated region
    $region38: #{tpu_custom_call.1} parent=1 // pred_check
      _
    $region39: #{tpu_custom_call.1} parent=1 // pred_check_branch
      %71 = sbr.rel (0) target = $region41
    $region40: #{tpu_custom_call.1} parent=1 // pred_region
      _
    $region41: #{tpu_custom_call.1} parent=1 // pred_fallthru
      _
    // Predicated region
    $region42: #{tpu_custom_call.1} parent=1 // pred_check
      _
    $region43: #{tpu_custom_call.1} parent=1 // pred_check_branch
      %73 = sbr.rel (0) target = $region45
    $region44: #{tpu_custom_call.1} parent=1 // pred_region
      _
    $region45: #{tpu_custom_call.1} parent=1 // pred_fallthru
      _
    // Predicated region
    $region46: #{tpu_custom_call.1} parent=1 // pred_check
      _
    $region47: #{tpu_custom_call.1} parent=1 // pred_check_branch
      %75 = sbr.rel (0) target = $region49
    $region48: #{tpu_custom_call.1} parent=1 // pred_region
      %76 = dma.done [#allocation5], 16
    $region49: #{tpu_custom_call.1} parent=1 // pred_fallthru
      _
    // Predicated region
    $region50: #{tpu_custom_call.1} parent=1 // pred_check
      _
    $region51: #{tpu_custom_call.1} parent=1 // pred_check_branch
      %78 = sbr.rel (0) target = $region53
    $region52: #{tpu_custom_call.1} parent=1 // pred_region
      %79 = dma.done [#allocation8], 16
    $region53: #{tpu_custom_call.1} parent=1 // pred_fallthru
      _
    // Predicated region
    $region54: #{tpu_custom_call.1} parent=1 // pred_check
      _
    $region55: #{tpu_custom_call.1} parent=1 // pred_check_branch
      %81 = sbr.rel (0) target = $region57
    $region56: #{tpu_custom_call.1} parent=1 // pred_region
      %82 = dma.done [#allocation8], 16
    $region57: #{tpu_custom_call.1} parent=1 // pred_fallthru
      _
    // Predicated region
    $region58: #{tpu_custom_call.1} parent=1 // pred_check
      _
    $region59: #{tpu_custom_call.1} parent=1 // pred_check_branch
      %84 = sbr.rel (0) target = $region61
    $region60: #{tpu_custom_call.1} parent=1 // pred_region
      %85 = dma.done [#allocation11], 16
    $region61: #{tpu_custom_call.1} parent=1 // pred_fallthru
      _
    %v86 = vld [vmem:[%s0] sm:$0xff]
    %v87 = vld [vmem:[%s0 + $0x8] sm:$0xff]
    %v88 = vld [vmem:[%s0 + $0x10] sm:$0xff]
    %v89 = vld [vmem:[%s0 + $0x18] sm:$0xff]
    %v90 = vld [vmem:[%s0 + $0x20] sm:$0xff]
    %v91 = vld [vmem:[%s0 + $0x28] sm:$0xff]
    %v92 = vld [vmem:[%s0 + $0x30] sm:$0xff]
    %v93 = vld [vmem:[%s0 + $0x38] sm:$0xff]
    %v94 = vld [vmem:[%s1] sm:$0xff]
    %v95 = vld [vmem:[%s1 + $0x8] sm:$0xff]
    %v96 = vld [vmem:[#allocation4] sm:$0x1]
    %v98 = vlaneseq
    %v99 = vshrl.u32 %v98, 7
    %v100 = vsub.s32 0, %v99
    %v101 = vrot.slane %v96, %v100
    %vm103 = vcmask 130048
    %v105 = vsel %vm103, %v86, 0
    %v108 = vsel %vm103, %v87, 0
    %v111 = vsel %vm103, %v88, 0
    %v114 = vsel %vm103, %v89, 0
    %v117 = vsel %vm103, %v90, 0
    %v120 = vsel %vm103, %v91, 0
    %v123 = vsel %vm103, %v92, 0
    %v126 = vsel %vm103, %v93, 0
    %128 = vmatprep.subr.mxu0 0.0
    %129 = vmatpush1.msra.mxu0 0.0
    %130 = vmatprep.subr.mxu0 0.0
    %131 = vmatpush1.msra.mxu0 0.0
    %132 = vmatprep.subr.mxu0 0.0
    %133 = vmatpush1.msra.mxu0 0.0
    %134 = vmatprep.subr.mxu0 0.0
    %135 = vmatpush1.msra.mxu0 0.0
    %136 = vmatprep.subr.mxu0 0.0
    %137 = vmatpush1.msra.mxu0 0.0
    %138 = vmatprep.subr.mxu0 0.0
    %139 = vmatpush1.msra.mxu0 0.0
    %140 = vmatprep.subr.mxu0 0.0
    %141 = vmatpush1.msra.mxu0 0.0
    %142 = vmatprep.subr.mxu0 0.0
    %143 = vmatpush1.msra.mxu0 0.0
    %144 = vmatprep.subr.mxu0 0.0
    %145 = vmatpush1.msra.mxu0 0.0
    %146 = vmatprep.subr.mxu0 0.0
    %147 = vmatpush1.msra.mxu0 0.0
    %148 = vmatprep.subr.mxu0 0.0
    %149 = vmatpush1.msra.mxu0 0.0
    %150 = vmatprep.subr.mxu0 0.0
    %151 = vmatpush1.msra.mxu0 0.0
    %152 = vmatprep.subr.mxu0 0.0
    %153 = vmatpush1.msra.mxu0 0.0
    %154 = vmatprep.subr.mxu0 0.0
    %155 = vmatpush1.msra.mxu0 0.0
    %156 = vmatprep.subr.mxu0 0.0
    %157 = vmatpush1.msra.mxu0 %v95
    %158 = vmatprep.subr.mxu0 0.0
    %159 = vmatpush1.msra.mxu0 %v94
    %160 = vmatprep.subr.mxu0 0.0
    %161 = vmatpush2.msra.mxu0 0.0
    %162 = vmatprep.subr.mxu0 0.0
    %163 = vmatpush2.msra.mxu0 0.0
    %164 = vmatprep.subr.mxu0 0.0
    %165 = vmatpush2.msra.mxu0 0.0
    %166 = vmatprep.subr.mxu0 0.0
    %167 = vmatpush2.msra.mxu0 0.0
    %168 = vmatprep.subr.mxu0 0.0
    %169 = vmatpush2.msra.mxu0 0.0
    %170 = vmatprep.subr.mxu0 0.0
    %171 = vmatpush2.msra.mxu0 0.0
    %172 = vmatprep.subr.mxu0 0.0
    %173 = vmatpush2.msra.mxu0 0.0
    %174 = vmatprep.subr.mxu0 0.0
    %175 = vmatpush2.msra.mxu0 0.0
    %176 = vmatprep.subr.mxu0 0.0
    %177 = vmatpush2.msra.mxu0 0.0
    %178 = vmatprep.subr.mxu0 0.0
    %179 = vmatpush2.msra.mxu0 0.0
    %180 = vmatprep.subr.mxu0 0.0
    %181 = vmatpush2.msra.mxu0 0.0
    %182 = vmatprep.subr.mxu0 0.0
    %183 = vmatpush2.msra.mxu0 0.0
    %184 = vmatprep.subr.mxu0 0.0
    %185 = vmatpush2.msra.mxu0 0.0
    %186 = vmatprep.subr.mxu0 0.0
    %187 = vmatpush2.msra.mxu0 0.0
    %188 = vmatprep.subr.mxu0 0.0
    %189 = vmatpush2.msra.mxu0 0.0
    %190 = vmatprep.subr.mxu0 0.0
    %191 = vmatpush2.msra.mxu0 0.0
    %192 = vmatprep.mubr.f32.mxu0 0.0
    %193 = vmatmul.mubr.f32.gmra.mxu0 %v105
    %v194 = vpop.f32.mrf.mxu0
    %v195 = vadd.f32 %v101, %v194
    %v196 = vpop.f32.mrf.mxu0
    %197 = vmatprep.mubr.f32.mxu0 0.0
    %198 = vmatmul.mubr.f32.gmra.mxu0 %v108
    %v199 = vpop.f32.mrf.mxu0
    %v200 = vadd.f32 %v101, %v199
    %v201 = vpop.f32.mrf.mxu0
    %202 = vmatprep.mubr.f32.mxu0 0.0
    %203 = vmatmul.mubr.f32.gmra.mxu0 %v111
    %v204 = vpop.f32.mrf.mxu0
    %v205 = vadd.f32 %v101, %v204
    %v206 = vpop.f32.mrf.mxu0
    %207 = vmatprep.mubr.f32.mxu0 0.0
    %208 = vmatmul.mubr.f32.gmra.mxu0 %v114
    %v209 = vpop.f32.mrf.mxu0
    %v210 = vadd.f32 %v101, %v209
    %v211 = vpop.f32.mrf.mxu0
    %212 = vmatprep.mubr.f32.mxu0 0.0
    %213 = vmatmul.mubr.f32.gmra.mxu0 %v117
    %v214 = vpop.f32.mrf.mxu0
    %v215 = vadd.f32 %v101, %v214
    %v216 = vpop.f32.mrf.mxu0
    %217 = vmatprep.mubr.f32.mxu0 0.0
    %218 = vmatmul.mubr.f32.gmra.mxu0 %v120
    %v219 = vpop.f32.mrf.mxu0
    %v220 = vadd.f32 %v101, %v219
    %v221 = vpop.f32.mrf.mxu0
    %222 = vmatprep.mubr.f32.mxu0 0.0
    %223 = vmatmul.mubr.f32.gmra.mxu0 %v123
    %v224 = vpop.f32.mrf.mxu0
    %v225 = vadd.f32 %v101, %v224
    %v226 = vpop.f32.mrf.mxu0
    %227 = vmatprep.mubr.f32.mxu0 0.0
    %228 = vmatmul.mubr.f32.gmra.mxu0 %v126
    %v229 = vpop.f32.mrf.mxu0
    %v230 = vadd.f32 %v101, %v229
    %v231 = vpop.f32.mrf.mxu0
    %232 = vdwg.mxu0
    %vm233 = vcmask 785408
    %234 = vst.msk [vmem:[#allocation3] sm:$0xff] %vm233, %v195
    %235 = vst.msk [vmem:[#allocation3 + $0x8] sm:$0xff] %vm233, %v200
    %236 = vst.msk [vmem:[#allocation3 + $0x10] sm:$0xff] %vm233, %v205
    %237 = vst.msk [vmem:[#allocation3 + $0x18] sm:$0xff] %vm233, %v210
    %238 = vst.msk [vmem:[#allocation3 + $0x20] sm:$0xff] %vm233, %v215
    %239 = vst.msk [vmem:[#allocation3 + $0x28] sm:$0xff] %vm233, %v220
    %240 = vst.msk [vmem:[#allocation3 + $0x30] sm:$0xff] %vm233, %v225
    %241 = vst.msk [vmem:[#allocation3 + $0x38] sm:$0xff] %vm233, %v230
    %v242 = vld [vmem:[%s2] sm:$0xff]
    %v243 = vld [vmem:[%s2 + $0x8] sm:$0xff]
    %v244 = vld [vmem:[%s2 + $0x10] sm:$0xff]
    %v245 = vld [vmem:[%s2 + $0x18] sm:$0xff]
    %v246 = vld [vmem:[#allocation7] sm:$0x1]
    %v247 = vld [vmem:[#allocation3] sm:$0xff]
    %vm248 = vcmask 261120
    %v250 = vsel %vm248, 0.0, 0
    %252 = vmatprep.subr.mxu0 0.0
    %253 = vmatpush1.msra.mxu0 0.0
    %254 = vmatprep.subr.mxu0 0.0
    %255 = vmatpush1.msra.mxu0 0.0
    %256 = vmatprep.subr.mxu0 0.0
    %257 = vmatpush1.msra.mxu0 0.0
    %258 = vmatprep.subr.mxu0 0.0
    %259 = vmatpush1.msra.mxu0 0.0
    %260 = vmatprep.subr.mxu0 0.0
    %261 = vmatpush1.msra.mxu0 0.0
    %262 = vmatprep.subr.mxu0 0.0
    %263 = vmatpush1.msra.mxu0 0.0
    %264 = vmatprep.subr.mxu0 0.0
    %265 = vmatpush1.msra.mxu0 0.0
    %266 = vmatprep.subr.mxu0 0.0
    %267 = vmatpush1.msra.mxu0 0.0
    %268 = vmatprep.subr.mxu0 0.0
    %269 = vmatpush1.msra.mxu0 0.0
    %270 = vmatprep.subr.mxu0 0.0
    %271 = vmatpush1.msra.mxu0 0.0
    %272 = vmatprep.subr.mxu0 0.0
    %273 = vmatpush1.msra.mxu0 0.0
    %274 = vmatprep.subr.mxu0 0.0
    %275 = vmatpush1.msra.mxu0 0.0
    %276 = vmatprep.subr.mxu0 0.0
    %277 = vmatpush1.msra.mxu0 %v245
    %278 = vmatprep.subr.mxu0 0.0
    %279 = vmatpush1.msra.mxu0 %v244
    %280 = vmatprep.subr.mxu0 0.0
    %281 = vmatpush1.msra.mxu0 %v243
    %282 = vmatprep.subr.mxu0 0.0
    %283 = vmatpush1.msra.mxu0 %v242
    %284 = vmatprep.subr.mxu0 0.0
    %285 = vmatpush2.msra.mxu0 0.0
    %286 = vmatprep.subr.mxu0 0.0
    %287 = vmatpush2.msra.mxu0 0.0
    %288 = vmatprep.subr.mxu0 0.0
    %289 = vmatpush2.msra.mxu0 0.0
    %290 = vmatprep.subr.mxu0 0.0
    %291 = vmatpush2.msra.mxu0 0.0
    %292 = vmatprep.subr.mxu0 0.0
    %293 = vmatpush2.msra.mxu0 0.0
    %294 = vmatprep.subr.mxu0 0.0
    %295 = vmatpush2.msra.mxu0 0.0
    %296 = vmatprep.subr.mxu0 0.0
    %297 = vmatpush2.msra.mxu0 0.0
    %298 = vmatprep.subr.mxu0 0.0
    %299 = vmatpush2.msra.mxu0 0.0
    %300 = vmatprep.subr.mxu0 0.0
    %301 = vmatpush2.msra.mxu0 0.0
    %302 = vmatprep.subr.mxu0 0.0
    %303 = vmatpush2.msra.mxu0 0.0
    %304 = vmatprep.subr.mxu0 0.0
    %305 = vmatpush2.msra.mxu0 0.0
    %306 = vmatprep.subr.mxu0 0.0
    %307 = vmatpush2.msra.mxu0 0.0
    %308 = vmatprep.subr.mxu0 0.0
    %309 = vmatpush2.msra.mxu0 0.0
    %310 = vmatprep.subr.mxu0 0.0
    %311 = vmatpush2.msra.mxu0 0.0
    %312 = vmatprep.subr.mxu0 0.0
    %313 = vmatpush2.msra.mxu0 0.0
    %314 = vmatprep.subr.mxu0 0.0
    %315 = vmatpush2.msra.mxu0 0.0
    %316 = vmatprep.mubr.f32.mxu0 0.0
    %317 = vmatmul.mubr.f32.gmra.mxu0 %v250
    %v318 = vpop.f32.mrf.mxu0
    %v319 = vadd.f32 0.0, %v318
    %v320 = vpop.f32.mrf.mxu0
    %321 = vdwg.mxu0
    %v322 = vadd.f32 %v247, %v319
    %v323 = vxor.u32 %v322, 2147483648
    %v324 = vmul.f32 %v323, 1.442695
    %v325 = vpow.pop %v324
    %v326 = vadd.f32 %v325, 1.0
    %v327 = vrcp.pop %v326
    %v328 = vmul.f32 1.0, %v327
    %v330 = vlaneseq
    %v331 = vshrl.u32 %v330, 7
    %v332 = vsub.s32 0, %v331
    %v333 = vrot.slane %v246, %v332
    %334 = vrot.lane.b32.xlu0 %v333, 64
    %v335 = vpop.permute.xlu0 %334
    %v337 = vadd.f32 %v319, %v335
    %339 = vrot.lane.b32.xlu0 %v337, 64
    %v340 = vpop.permute.xlu0 %339
    %v342 = vmul.f32 %v328, %v340
    %344 = vrot.lane.b32.xlu0 %v342, 64
    %v345 = vpop.permute.xlu0 %344
    %v347 = vadd.f32 %v247, %v345
    %v348 = vtanh.pop %v347
    %v349 = vsub.f32 0.0, %v348
    %351 = vrot.lane.b32.xlu0 %v349, 96
    %v352 = vpop.permute.xlu0 %351
    %v354 = vmul.f32 %v328, %v352
    %356 = vrot.lane.b32.xlu0 %v354, 32
    %v357 = vpop.permute.xlu0 %356
    %v359 = vadd.f32 %v348, %v357
    %361 = vrot.lane.b32.xlu0 %v359, 64
    %v362 = vpop.permute.xlu0 %361
    %364 = vst.msk [vmem:[#allocation2] sm:$0xff] %vm248, %v362
    %s365 = scalar_lea.vmem [#allocation3], 8
    %v366 = vld [vmem:[%s365] sm:$0xff]
    %v367 = vsel %vm248, %v362, 0
    %369 = vmatprep.subr.mxu0 0.0
    %370 = vmatpush1.msra.mxu0 0.0
    %371 = vmatprep.subr.mxu0 0.0
    %372 = vmatpush1.msra.mxu0 0.0
    %373 = vmatprep.subr.mxu0 0.0
    %374 = vmatpush1.msra.mxu0 0.0
    %375 = vmatprep.subr.mxu0 0.0
    %376 = vmatpush1.msra.mxu0 0.0
    %377 = vmatprep.subr.mxu0 0.0
    %378 = vmatpush1.msra.mxu0 0.0
    %379 = vmatprep.subr.mxu0 0.0
    %380 = vmatpush1.msra.mxu0 0.0
    %381 = vmatprep.subr.mxu0 0.0
    %382 = vmatpush1.msra.mxu0 0.0
    %383 = vmatprep.subr.mxu0 0.0
    %384 = vmatpush1.msra.mxu0 0.0
    %385 = vmatprep.subr.mxu0 0.0
    %386 = vmatpush1.msra.mxu0 0.0
    %387 = vmatprep.subr.mxu0 0.0
    %388 = vmatpush1.msra.mxu0 0.0
    %389 = vmatprep.subr.mxu0 0.0
    %390 = vmatpush1.msra.mxu0 0.0
    %391 = vmatprep.subr.mxu0 0.0
    %392 = vmatpush1.msra.mxu0 0.0
    %393 = vmatprep.subr.mxu0 0.0
    %394 = vmatpush1.msra.mxu0 %v245
    %395 = vmatprep.subr.mxu0 0.0
    %396 = vmatpush1.msra.mxu0 %v244
    %397 = vmatprep.subr.mxu0 0.0
    %398 = vmatpush1.msra.mxu0 %v243
    %399 = vmatprep.subr.mxu0 0.0
    %400 = vmatpush1.msra.mxu0 %v242
    %401 = vmatprep.subr.mxu0 0.0
    %402 = vmatpush2.msra.mxu0 0.0
    %403 = vmatprep.subr.mxu0 0.0
    %404 = vmatpush2.msra.mxu0 0.0
    %405 = vmatprep.subr.mxu0 0.0
    %406 = vmatpush2.msra.mxu0 0.0
    %407 = vmatprep.subr.mxu0 0.0
    %408 = vmatpush2.msra.mxu0 0.0
    %409 = vmatprep.subr.mxu0 0.0
    %410 = vmatpush2.msra.mxu0 0.0
    %411 = vmatprep.subr.mxu0 0.0
    %412 = vmatpush2.msra.mxu0 0.0
    %413 = vmatprep.subr.mxu0 0.0
    %414 = vmatpush2.msra.mxu0 0.0
    %415 = vmatprep.subr.mxu0 0.0
    %416 = vmatpush2.msra.mxu0 0.0
    %417 = vmatprep.subr.mxu0 0.0
    %418 = vmatpush2.msra.mxu0 0.0
    %419 = vmatprep.subr.mxu0 0.0
    %420 = vmatpush2.msra.mxu0 0.0
    %421 = vmatprep.subr.mxu0 0.0
    %422 = vmatpush2.msra.mxu0 0.0
    %423 = vmatprep.subr.mxu0 0.0
    %424 = vmatpush2.msra.mxu0 0.0
    %425 = vmatprep.subr.mxu0 0.0
    %426 = vmatpush2.msra.mxu0 0.0
    %427 = vmatprep.subr.mxu0 0.0
    %428 = vmatpush2.msra.mxu0 0.0
    %429 = vmatprep.subr.mxu0 0.0
    %430 = vmatpush2.msra.mxu0 0.0
    %431 = vmatprep.subr.mxu0 0.0
    %432 = vmatpush2.msra.mxu0 0.0
    %433 = vmatprep.mubr.f32.mxu0 0.0
    %434 = vmatmul.mubr.f32.gmra.mxu0 %v367
    %v435 = vpop.f32.mrf.mxu0
    %v436 = vadd.f32 0.0, %v435
    %v437 = vpop.f32.mrf.mxu0
    %438 = vdwg.mxu0
    %v439 = vadd.f32 %v366, %v436
    %v440 = vxor.u32 %v439, 2147483648
    %v441 = vmul.f32 %v440, 1.442695
    %v442 = vpow.pop %v441
    %v443 = vadd.f32 %v442, 1.0
    %v444 = vrcp.pop %v443
    %v445 = vmul.f32 1.0, %v444
    %v446 = vadd.f32 %v436, %v335
    %448 = vrot.lane.b32.xlu0 %v446, 64
    %v449 = vpop.permute.xlu0 %448
    %v451 = vmul.f32 %v445, %v449
    %453 = vrot.lane.b32.xlu0 %v451, 64
    %v454 = vpop.permute.xlu0 %453
    %v456 = vadd.f32 %v366, %v454
    %v457 = vtanh.pop %v456
    %v458 = vsub.f32 %v359, %v457
    %460 = vrot.lane.b32.xlu0 %v458, 96
    %v461 = vpop.permute.xlu0 %460
    %v463 = vmul.f32 %v445, %v461
    %465 = vrot.lane.b32.xlu0 %v463, 32
    %v466 = vpop.permute.xlu0 %465
    %v468 = vadd.f32 %v457, %v466
    %470 = vrot.lane.b32.xlu0 %v468, 64
    %v471 = vpop.permute.xlu0 %470
    %s473 = scalar_lea.vmem [#allocation2], 8
    %474 = vst.msk [vmem:[%s473] sm:$0xff] %vm248, %v471
    %s475 = scalar_lea.vmem [#allocation3], 16
    %v476 = vld [vmem:[%s475] sm:$0xff]
    %v477 = vsel %vm248, %v471, 0
    %479 = vmatprep.subr.mxu0 0.0
    %480 = vmatpush1.msra.mxu0 0.0
    %481 = vmatprep.subr.mxu0 0.0
    %482 = vmatpush1.msra.mxu0 0.0
    %483 = vmatprep.subr.mxu0 0.0
    %484 = vmatpush1.msra.mxu0 0.0
    %485 = vmatprep.subr.mxu0 0.0
    %486 = vmatpush1.msra.mxu0 0.0
    %487 = vmatprep.subr.mxu0 0.0
    %488 = vmatpush1.msra.mxu0 0.0
    %489 = vmatprep.subr.mxu0 0.0
    %490 = vmatpush1.msra.mxu0 0.0
    %491 = vmatprep.subr.mxu0 0.0
    %492 = vmatpush1.msra.mxu0 0.0
    %493 = vmatprep.subr.mxu0 0.0
    %494 = vmatpush1.msra.mxu0 0.0
    %495 = vmatprep.subr.mxu0 0.0
    %496 = vmatpush1.msra.mxu0 0.0
    %497 = vmatprep.subr.mxu0 0.0
    %498 = vmatpush1.msra.mxu0 0.0
    %499 = vmatprep.subr.mxu0 0.0
    %500 = vmatpush1.msra.mxu0 0.0
    %501 = vmatprep.subr.mxu0 0.0
    %502 = vmatpush1.msra.mxu0 0.0
    %503 = vmatprep.subr.mxu0 0.0
    %504 = vmatpush1.msra.mxu0 %v245
    %505 = vmatprep.subr.mxu0 0.0
    %506 = vmatpush1.msra.mxu0 %v244
    %507 = vmatprep.subr.mxu0 0.0
    %508 = vmatpush1.msra.mxu0 %v243
    %509 = vmatprep.subr.mxu0 0.0
    %510 = vmatpush1.msra.mxu0 %v242
    %511 = vmatprep.subr.mxu0 0.0
    %512 = vmatpush2.msra.mxu0 0.0
    %513 = vmatprep.subr.mxu0 0.0
    %514 = vmatpush2.msra.mxu0 0.0
    %515 = vmatprep.subr.mxu0 0.0
    %516 = vmatpush2.msra.mxu0 0.0
    %517 = vmatprep.subr.mxu0 0.0
    %518 = vmatpush2.msra.mxu0 0.0
    %519 = vmatprep.subr.mxu0 0.0
    %520 = vmatpush2.msra.mxu0 0.0
    %521 = vmatprep.subr.mxu0 0.0
    %522 = vmatpush2.msra.mxu0 0.0
    %523 = vmatprep.subr.mxu0 0.0
    %524 = vmatpush2.msra.mxu0 0.0
    %525 = vmatprep.subr.mxu0 0.0
    %526 = vmatpush2.msra.mxu0 0.0
    %527 = vmatprep.subr.mxu0 0.0
    %528 = vmatpush2.msra.mxu0 0.0
    %529 = vmatprep.subr.mxu0 0.0
    %530 = vmatpush2.msra.mxu0 0.0
    %531 = vmatprep.subr.mxu0 0.0
    %532 = vmatpush2.msra.mxu0 0.0
    %533 = vmatprep.subr.mxu0 0.0
    %534 = vmatpush2.msra.mxu0 0.0
    %535 = vmatprep.subr.mxu0 0.0
    %536 = vmatpush2.msra.mxu0 0.0
    %537 = vmatprep.subr.mxu0 0.0
    %538 = vmatpush2.msra.mxu0 0.0
    %539 = vmatprep.subr.mxu0 0.0
    %540 = vmatpush2.msra.mxu0 0.0
    %541 = vmatprep.subr.mxu0 0.0
    %542 = vmatpush2.msra.mxu0 0.0
    %543 = vmatprep.mubr.f32.mxu0 0.0
    %544 = vmatmul.mubr.f32.gmra.mxu0 %v477
    %v545 = vpop.f32.mrf.mxu0
    %v546 = vadd.f32 0.0, %v545
    %v547 = vpop.f32.mrf.mxu0
    %548 = vdwg.mxu0
    %v549 = vadd.f32 %v476, %v546
    %v550 = vxor.u32 %v549, 2147483648
    %v551 = vmul.f32 %v550, 1.442695
    %v552 = vpow.pop %v551
    %v553 = vadd.f32 %v552, 1.0
    %v554 = vrcp.pop %v553
    %v555 = vmul.f32 1.0, %v554
    %v556 = vadd.f32 %v546, %v335
    %558 = vrot.lane.b32.xlu0 %v556, 64
    %v559 = vpop.permute.xlu0 %558
    %v561 = vmul.f32 %v555, %v559
    %563 = vrot.lane.b32.xlu0 %v561, 64
    %v564 = vpop.permute.xlu0 %563
    %v566 = vadd.f32 %v476, %v564
    %v567 = vtanh.pop %v566
    %v568 = vsub.f32 %v468, %v567
    %570 = vrot.lane.b32.xlu0 %v568, 96
    %v571 = vpop.permute.xlu0 %570
    %v573 = vmul.f32 %v555, %v571
    %575 = vrot.lane.b32.xlu0 %v573, 32
    %v576 = vpop.permute.xlu0 %575
    %v578 = vadd.f32 %v567, %v576
    %580 = vrot.lane.b32.xlu0 %v578, 64
    %v581 = vpop.permute.xlu0 %580
    %s583 = scalar_lea.vmem [#allocation2], 16
    %584 = vst.msk [vmem:[%s583] sm:$0xff] %vm248, %v581
    %s585 = scalar_lea.vmem [#allocation3], 24
    %v586 = vld [vmem:[%s585] sm:$0xff]
    %v587 = vsel %vm248, %v581, 0
    %589 = vmatprep.subr.mxu0 0.0
    %590 = vmatpush1.msra.mxu0 0.0
    %591 = vmatprep.subr.mxu0 0.0
    %592 = vmatpush1.msra.mxu0 0.0
    %593 = vmatprep.subr.mxu0 0.0
    %594 = vmatpush1.msra.mxu0 0.0
    %595 = vmatprep.subr.mxu0 0.0
    %596 = vmatpush1.msra.mxu0 0.0
    %597 = vmatprep.subr.mxu0 0.0
    %598 = vmatpush1.msra.mxu0 0.0
    %599 = vmatprep.subr.mxu0 0.0
    %600 = vmatpush1.msra.mxu0 0.0
    %601 = vmatprep.subr.mxu0 0.0
    %602 = vmatpush1.msra.mxu0 0.0
    %603 = vmatprep.subr.mxu0 0.0
    %604 = vmatpush1.msra.mxu0 0.0
    %605 = vmatprep.subr.mxu0 0.0
    %606 = vmatpush1.msra.mxu0 0.0
    %607 = vmatprep.subr.mxu0 0.0
    %608 = vmatpush1.msra.mxu0 0.0
    %609 = vmatprep.subr.mxu0 0.0
    %610 = vmatpush1.msra.mxu0 0.0
    %611 = vmatprep.subr.mxu0 0.0
    %612 = vmatpush1.msra.mxu0 0.0
    %613 = vmatprep.subr.mxu0 0.0
    %614 = vmatpush1.msra.mxu0 %v245
    %615 = vmatprep.subr.mxu0 0.0
    %616 = vmatpush1.msra.mxu0 %v244
    %617 = vmatprep.subr.mxu0 0.0
    %618 = vmatpush1.msra.mxu0 %v243
    %619 = vmatprep.subr.mxu0 0.0
    %620 = vmatpush1.msra.mxu0 %v242
    %621 = vmatprep.subr.mxu0 0.0
    %622 = vmatpush2.msra.mxu0 0.0
    %623 = vmatprep.subr.mxu0 0.0
    %624 = vmatpush2.msra.mxu0 0.0
    %625 = vmatprep.subr.mxu0 0.0
    %626 = vmatpush2.msra.mxu0 0.0
    %627 = vmatprep.subr.mxu0 0.0
    %628 = vmatpush2.msra.mxu0 0.0
    %629 = vmatprep.subr.mxu0 0.0
    %630 = vmatpush2.msra.mxu0 0.0
    %631 = vmatprep.subr.mxu0 0.0
    %632 = vmatpush2.msra.mxu0 0.0
    %633 = vmatprep.subr.mxu0 0.0
    %634 = vmatpush2.msra.mxu0 0.0
    %635 = vmatprep.subr.mxu0 0.0
    %636 = vmatpush2.msra.mxu0 0.0
    %637 = vmatprep.subr.mxu0 0.0
    %638 = vmatpush2.msra.mxu0 0.0
    %639 = vmatprep.subr.mxu0 0.0
    %640 = vmatpush2.msra.mxu0 0.0
    %641 = vmatprep.subr.mxu0 0.0
    %642 = vmatpush2.msra.mxu0 0.0
    %643 = vmatprep.subr.mxu0 0.0
    %644 = vmatpush2.msra.mxu0 0.0
    %645 = vmatprep.subr.mxu0 0.0
    %646 = vmatpush2.msra.mxu0 0.0
    %647 = vmatprep.subr.mxu0 0.0
    %648 = vmatpush2.msra.mxu0 0.0
    %649 = vmatprep.subr.mxu0 0.0
    %650 = vmatpush2.msra.mxu0 0.0
    %651 = vmatprep.subr.mxu0 0.0
    %652 = vmatpush2.msra.mxu0 0.0
    %653 = vmatprep.mubr.f32.mxu0 0.0
    %654 = vmatmul.mubr.f32.gmra.mxu0 %v587
    %v655 = vpop.f32.mrf.mxu0
    %v656 = vadd.f32 0.0, %v655
    %v657 = vpop.f32.mrf.mxu0
    %658 = vdwg.mxu0
    %v659 = vadd.f32 %v586, %v656
    %v660 = vxor.u32 %v659, 2147483648
    %v661 = vmul.f32 %v660, 1.442695
    %v662 = vpow.pop %v661
    %v663 = vadd.f32 %v662, 1.0
    %v664 = vrcp.pop %v663
    %v665 = vmul.f32 1.0, %v664
    %v666 = vadd.f32 %v656, %v335
    %668 = vrot.lane.b32.xlu0 %v666, 64
    %v669 = vpop.permute.xlu0 %668
    %v671 = vmul.f32 %v665, %v669
    %673 = vrot.lane.b32.xlu0 %v671, 64
    %v674 = vpop.permute.xlu0 %673
    %v676 = vadd.f32 %v586, %v674
    %v677 = vtanh.pop %v676
    %v678 = vsub.f32 %v578, %v677
    %680 = vrot.lane.b32.xlu0 %v678, 96
    %v681 = vpop.permute.xlu0 %680
    %v683 = vmul.f32 %v665, %v681
    %685 = vrot.lane.b32.xlu0 %v683, 32
    %v686 = vpop.permute.xlu0 %685
    %v688 = vadd.f32 %v677, %v686
    %690 = vrot.lane.b32.xlu0 %v688, 64
    %v691 = vpop.permute.xlu0 %690
    %s693 = scalar_lea.vmem [#allocation2], 24
    %694 = vst.msk [vmem:[%s693] sm:$0xff] %vm248, %v691
    %s695 = scalar_lea.vmem [#allocation3], 32
    %v696 = vld [vmem:[%s695] sm:$0xff]
    %v697 = vsel %vm248, %v691, 0
    %699 = vmatprep.subr.mxu0 0.0
    %700 = vmatpush1.msra.mxu0 0.0
    %701 = vmatprep.subr.mxu0 0.0
    %702 = vmatpush1.msra.mxu0 0.0
    %703 = vmatprep.subr.mxu0 0.0
    %704 = vmatpush1.msra.mxu0 0.0
    %705 = vmatprep.subr.mxu0 0.0
    %706 = vmatpush1.msra.mxu0 0.0
    %707 = vmatprep.subr.mxu0 0.0
    %708 = vmatpush1.msra.mxu0 0.0
    %709 = vmatprep.subr.mxu0 0.0
    %710 = vmatpush1.msra.mxu0 0.0
    %711 = vmatprep.subr.mxu0 0.0
    %712 = vmatpush1.msra.mxu0 0.0
    %713 = vmatprep.subr.mxu0 0.0
    %714 = vmatpush1.msra.mxu0 0.0
    %715 = vmatprep.subr.mxu0 0.0
    %716 = vmatpush1.msra.mxu0 0.0
    %717 = vmatprep.subr.mxu0 0.0
    %718 = vmatpush1.msra.mxu0 0.0
    %719 = vmatprep.subr.mxu0 0.0
    %720 = vmatpush1.msra.mxu0 0.0
    %721 = vmatprep.subr.mxu0 0.0
    %722 = vmatpush1.msra.mxu0 0.0
    %723 = vmatprep.subr.mxu0 0.0
    %724 = vmatpush1.msra.mxu0 %v245
    %725 = vmatprep.subr.mxu0 0.0
    %726 = vmatpush1.msra.mxu0 %v244
    %727 = vmatprep.subr.mxu0 0.0
    %728 = vmatpush1.msra.mxu0 %v243
    %729 = vmatprep.subr.mxu0 0.0
    %730 = vmatpush1.msra.mxu0 %v242
    %731 = vmatprep.subr.mxu0 0.0
    %732 = vmatpush2.msra.mxu0 0.0
    %733 = vmatprep.subr.mxu0 0.0
    %734 = vmatpush2.msra.mxu0 0.0
    %735 = vmatprep.subr.mxu0 0.0
    %736 = vmatpush2.msra.mxu0 0.0
    %737 = vmatprep.subr.mxu0 0.0
    %738 = vmatpush2.msra.mxu0 0.0
    %739 = vmatprep.subr.mxu0 0.0
    %740 = vmatpush2.msra.mxu0 0.0
    %741 = vmatprep.subr.mxu0 0.0
    %742 = vmatpush2.msra.mxu0 0.0
    %743 = vmatprep.subr.mxu0 0.0
    %744 = vmatpush2.msra.mxu0 0.0
    %745 = vmatprep.subr.mxu0 0.0
    %746 = vmatpush2.msra.mxu0 0.0
    %747 = vmatprep.subr.mxu0 0.0
    %748 = vmatpush2.msra.mxu0 0.0
    %749 = vmatprep.subr.mxu0 0.0
    %750 = vmatpush2.msra.mxu0 0.0
    %751 = vmatprep.subr.mxu0 0.0
    %752 = vmatpush2.msra.mxu0 0.0
    %753 = vmatprep.subr.mxu0 0.0
    %754 = vmatpush2.msra.mxu0 0.0
    %755 = vmatprep.subr.mxu0 0.0
    %756 = vmatpush2.msra.mxu0 0.0
    %757 = vmatprep.subr.mxu0 0.0
    %758 = vmatpush2.msra.mxu0 0.0
    %759 = vmatprep.subr.mxu0 0.0
    %760 = vmatpush2.msra.mxu0 0.0
    %761 = vmatprep.subr.mxu0 0.0
    %762 = vmatpush2.msra.mxu0 0.0
    %763 = vmatprep.mubr.f32.mxu0 0.0
    %764 = vmatmul.mubr.f32.gmra.mxu0 %v697
    %v765 = vpop.f32.mrf.mxu0
    %v766 = vadd.f32 0.0, %v765
    %v767 = vpop.f32.mrf.mxu0
    %768 = vdwg.mxu0
    %v769 = vadd.f32 %v696, %v766
    %v770 = vxor.u32 %v769, 2147483648
    %v771 = vmul.f32 %v770, 1.442695
    %v772 = vpow.pop %v771
    %v773 = vadd.f32 %v772, 1.0
    %v774 = vrcp.pop %v773
    %v775 = vmul.f32 1.0, %v774
    %v776 = vadd.f32 %v766, %v335
    %778 = vrot.lane.b32.xlu0 %v776, 64
    %v779 = vpop.permute.xlu0 %778
    %v781 = vmul.f32 %v775, %v779
    %783 = vrot.lane.b32.xlu0 %v781, 64
    %v784 = vpop.permute.xlu0 %783
    %v786 = vadd.f32 %v696, %v784
    %v787 = vtanh.pop %v786
    %v788 = vsub.f32 %v688, %v787
    %790 = vrot.lane.b32.xlu0 %v788, 96
    %v791 = vpop.permute.xlu0 %790
    %v793 = vmul.f32 %v775, %v791
    %795 = vrot.lane.b32.xlu0 %v793, 32
    %v796 = vpop.permute.xlu0 %795
    %v798 = vadd.f32 %v787, %v796
    %800 = vrot.lane.b32.xlu0 %v798, 64
    %v801 = vpop.permute.xlu0 %800
    %s803 = scalar_lea.vmem [#allocation2], 32
    %804 = vst.msk [vmem:[%s803] sm:$0xff] %vm248, %v801
    %s805 = scalar_lea.vmem [#allocation3], 40
    %v806 = vld [vmem:[%s805] sm:$0xff]
    %v807 = vsel %vm248, %v801, 0
    %809 = vmatprep.subr.mxu0 0.0
    %810 = vmatpush1.msra.mxu0 0.0
    %811 = vmatprep.subr.mxu0 0.0
    %812 = vmatpush1.msra.mxu0 0.0
    %813 = vmatprep.subr.mxu0 0.0
    %814 = vmatpush1.msra.mxu0 0.0
    %815 = vmatprep.subr.mxu0 0.0
    %816 = vmatpush1.msra.mxu0 0.0
    %817 = vmatprep.subr.mxu0 0.0
    %818 = vmatpush1.msra.mxu0 0.0
    %819 = vmatprep.subr.mxu0 0.0
    %820 = vmatpush1.msra.mxu0 0.0
    %821 = vmatprep.subr.mxu0 0.0
    %822 = vmatpush1.msra.mxu0 0.0
    %823 = vmatprep.subr.mxu0 0.0
    %824 = vmatpush1.msra.mxu0 0.0
    %825 = vmatprep.subr.mxu0 0.0
    %826 = vmatpush1.msra.mxu0 0.0
    %827 = vmatprep.subr.mxu0 0.0
    %828 = vmatpush1.msra.mxu0 0.0
    %829 = vmatprep.subr.mxu0 0.0
    %830 = vmatpush1.msra.mxu0 0.0
    %831 = vmatprep.subr.mxu0 0.0
    %832 = vmatpush1.msra.mxu0 0.0
    %833 = vmatprep.subr.mxu0 0.0
    %834 = vmatpush1.msra.mxu0 %v245
    %835 = vmatprep.subr.mxu0 0.0
    %836 = vmatpush1.msra.mxu0 %v244
    %837 = vmatprep.subr.mxu0 0.0
    %838 = vmatpush1.msra.mxu0 %v243
    %839 = vmatprep.subr.mxu0 0.0
    %840 = vmatpush1.msra.mxu0 %v242
    %841 = vmatprep.subr.mxu0 0.0
    %842 = vmatpush2.msra.mxu0 0.0
    %843 = vmatprep.subr.mxu0 0.0
    %844 = vmatpush2.msra.mxu0 0.0
    %845 = vmatprep.subr.mxu0 0.0
    %846 = vmatpush2.msra.mxu0 0.0
    %847 = vmatprep.subr.mxu0 0.0
    %848 = vmatpush2.msra.mxu0 0.0
    %849 = vmatprep.subr.mxu0 0.0
    %850 = vmatpush2.msra.mxu0 0.0
    %851 = vmatprep.subr.mxu0 0.0
    %852 = vmatpush2.msra.mxu0 0.0
    %853 = vmatprep.subr.mxu0 0.0
    %854 = vmatpush2.msra.mxu0 0.0
    %855 = vmatprep.subr.mxu0 0.0
    %856 = vmatpush2.msra.mxu0 0.0
    %857 = vmatprep.subr.mxu0 0.0
    %858 = vmatpush2.msra.mxu0 0.0
    %859 = vmatprep.subr.mxu0 0.0
    %860 = vmatpush2.msra.mxu0 0.0
    %861 = vmatprep.subr.mxu0 0.0
    %862 = vmatpush2.msra.mxu0 0.0
    %863 = vmatprep.subr.mxu0 0.0
    %864 = vmatpush2.msra.mxu0 0.0
    %865 = vmatprep.subr.mxu0 0.0
    %866 = vmatpush2.msra.mxu0 0.0
    %867 = vmatprep.subr.mxu0 0.0
    %868 = vmatpush2.msra.mxu0 0.0
    %869 = vmatprep.subr.mxu0 0.0
    %870 = vmatpush2.msra.mxu0 0.0
    %871 = vmatprep.subr.mxu0 0.0
    %872 = vmatpush2.msra.mxu0 0.0
    %873 = vmatprep.mubr.f32.mxu0 0.0
    %874 = vmatmul.mubr.f32.gmra.mxu0 %v807
    %v875 = vpop.f32.mrf.mxu0
    %v876 = vadd.f32 0.0, %v875
    %v877 = vpop.f32.mrf.mxu0
    %878 = vdwg.mxu0
    %v879 = vadd.f32 %v806, %v876
    %v880 = vxor.u32 %v879, 2147483648
    %v881 = vmul.f32 %v880, 1.442695
    %v882 = vpow.pop %v881
    %v883 = vadd.f32 %v882, 1.0
    %v884 = vrcp.pop %v883
    %v885 = vmul.f32 1.0, %v884
    %v886 = vadd.f32 %v876, %v335
    %888 = vrot.lane.b32.xlu0 %v886, 64
    %v889 = vpop.permute.xlu0 %888
    %v891 = vmul.f32 %v885, %v889
    %893 = vrot.lane.b32.xlu0 %v891, 64
    %v894 = vpop.permute.xlu0 %893
    %v896 = vadd.f32 %v806, %v894
    %v897 = vtanh.pop %v896
    %v898 = vsub.f32 %v798, %v897
    %900 = vrot.lane.b32.xlu0 %v898, 96
    %v901 = vpop.permute.xlu0 %900
    %v903 = vmul.f32 %v885, %v901
    %905 = vrot.lane.b32.xlu0 %v903, 32
    %v906 = vpop.permute.xlu0 %905
    %v908 = vadd.f32 %v897, %v906
    %910 = vrot.lane.b32.xlu0 %v908, 64
    %v911 = vpop.permute.xlu0 %910
    %s913 = scalar_lea.vmem [#allocation2], 40
    %914 = vst.msk [vmem:[%s913] sm:$0xff] %vm248, %v911
    %s915 = scalar_lea.vmem [#allocation3], 48
    %v916 = vld [vmem:[%s915] sm:$0xff]
    %v917 = vsel %vm248, %v911, 0
    %919 = vmatprep.subr.mxu0 0.0
    %920 = vmatpush1.msra.mxu0 0.0
    %921 = vmatprep.subr.mxu0 0.0
    %922 = vmatpush1.msra.mxu0 0.0
    %923 = vmatprep.subr.mxu0 0.0
    %924 = vmatpush1.msra.mxu0 0.0
    %925 = vmatprep.subr.mxu0 0.0
    %926 = vmatpush1.msra.mxu0 0.0
    %927 = vmatprep.subr.mxu0 0.0
    %928 = vmatpush1.msra.mxu0 0.0
    %929 = vmatprep.subr.mxu0 0.0
    %930 = vmatpush1.msra.mxu0 0.0
    %931 = vmatprep.subr.mxu0 0.0
    %932 = vmatpush1.msra.mxu0 0.0
    %933 = vmatprep.subr.mxu0 0.0
    %934 = vmatpush1.msra.mxu0 0.0
    %935 = vmatprep.subr.mxu0 0.0
    %936 = vmatpush1.msra.mxu0 0.0
    %937 = vmatprep.subr.mxu0 0.0
    %938 = vmatpush1.msra.mxu0 0.0
    %939 = vmatprep.subr.mxu0 0.0
    %940 = vmatpush1.msra.mxu0 0.0
    %941 = vmatprep.subr.mxu0 0.0
    %942 = vmatpush1.msra.mxu0 0.0
    %943 = vmatprep.subr.mxu0 0.0
    %944 = vmatpush1.msra.mxu0 %v245
    %945 = vmatprep.subr.mxu0 0.0
    %946 = vmatpush1.msra.mxu0 %v244
    %947 = vmatprep.subr.mxu0 0.0
    %948 = vmatpush1.msra.mxu0 %v243
    %949 = vmatprep.subr.mxu0 0.0
    %950 = vmatpush1.msra.mxu0 %v242
    %951 = vmatprep.subr.mxu0 0.0
    %952 = vmatpush2.msra.mxu0 0.0
    %953 = vmatprep.subr.mxu0 0.0
    %954 = vmatpush2.msra.mxu0 0.0
    %955 = vmatprep.subr.mxu0 0.0
    %956 = vmatpush2.msra.mxu0 0.0
    %957 = vmatprep.subr.mxu0 0.0
    %958 = vmatpush2.msra.mxu0 0.0
    %959 = vmatprep.subr.mxu0 0.0
    %960 = vmatpush2.msra.mxu0 0.0
    %961 = vmatprep.subr.mxu0 0.0
    %962 = vmatpush2.msra.mxu0 0.0
    %963 = vmatprep.subr.mxu0 0.0
    %964 = vmatpush2.msra.mxu0 0.0
    %965 = vmatprep.subr.mxu0 0.0
    %966 = vmatpush2.msra.mxu0 0.0
    %967 = vmatprep.subr.mxu0 0.0
    %968 = vmatpush2.msra.mxu0 0.0
    %969 = vmatprep.subr.mxu0 0.0
    %970 = vmatpush2.msra.mxu0 0.0
    %971 = vmatprep.subr.mxu0 0.0
    %972 = vmatpush2.msra.mxu0 0.0
    %973 = vmatprep.subr.mxu0 0.0
    %974 = vmatpush2.msra.mxu0 0.0
    %975 = vmatprep.subr.mxu0 0.0
    %976 = vmatpush2.msra.mxu0 0.0
    %977 = vmatprep.subr.mxu0 0.0
    %978 = vmatpush2.msra.mxu0 0.0
    %979 = vmatprep.subr.mxu0 0.0
    %980 = vmatpush2.msra.mxu0 0.0
    %981 = vmatprep.subr.mxu0 0.0
    %982 = vmatpush2.msra.mxu0 0.0
    %983 = vmatprep.mubr.f32.mxu0 0.0
    %984 = vmatmul.mubr.f32.gmra.mxu0 %v917
    %v985 = vpop.f32.mrf.mxu0
    %v986 = vadd.f32 0.0, %v985
    %v987 = vpop.f32.mrf.mxu0
    %988 = vdwg.mxu0
    %v989 = vadd.f32 %v916, %v986
    %v990 = vxor.u32 %v989, 2147483648
    %v991 = vmul.f32 %v990, 1.442695
    %v992 = vpow.pop %v991
    %v993 = vadd.f32 %v992, 1.0
    %v994 = vrcp.pop %v993
    %v995 = vmul.f32 1.0, %v994
    %v996 = vadd.f32 %v986, %v335
    %998 = vrot.lane.b32.xlu0 %v996, 64
    %v999 = vpop.permute.xlu0 %998
    %v1001 = vmul.f32 %v995, %v999
    %1003 = vrot.lane.b32.xlu0 %v1001, 64
    %v1004 = vpop.permute.xlu0 %1003
    %v1006 = vadd.f32 %v916, %v1004
    %v1007 = vtanh.pop %v1006
    %v1008 = vsub.f32 %v908, %v1007
    %1010 = vrot.lane.b32.xlu0 %v1008, 96
    %v1011 = vpop.permute.xlu0 %1010
    %v1013 = vmul.f32 %v995, %v1011
    %1015 = vrot.lane.b32.xlu0 %v1013, 32
    %v1016 = vpop.permute.xlu0 %1015
    %v1018 = vadd.f32 %v1007, %v1016
    %1020 = vrot.lane.b32.xlu0 %v1018, 64
    %v1021 = vpop.permute.xlu0 %1020
    %s1023 = scalar_lea.vmem [#allocation2], 48
    %1024 = vst.msk [vmem:[%s1023] sm:$0xff] %vm248, %v1021
    %s1025 = scalar_lea.vmem [#allocation3], 56
    %v1026 = vld [vmem:[%s1025] sm:$0xff]
    %v1027 = vsel %vm248, %v1021, 0
    %1029 = vmatprep.subr.mxu0 0.0
    %1030 = vmatpush1.msra.mxu0 0.0
    %1031 = vmatprep.subr.mxu0 0.0
    %1032 = vmatpush1.msra.mxu0 0.0
    %1033 = vmatprep.subr.mxu0 0.0
    %1034 = vmatpush1.msra.mxu0 0.0
    %1035 = vmatprep.subr.mxu0 0.0
    %1036 = vmatpush1.msra.mxu0 0.0
    %1037 = vmatprep.subr.mxu0 0.0
    %1038 = vmatpush1.msra.mxu0 0.0
    %1039 = vmatprep.subr.mxu0 0.0
    %1040 = vmatpush1.msra.mxu0 0.0
    %1041 = vmatprep.subr.mxu0 0.0
    %1042 = vmatpush1.msra.mxu0 0.0
    %1043 = vmatprep.subr.mxu0 0.0
    %1044 = vmatpush1.msra.mxu0 0.0
    %1045 = vmatprep.subr.mxu0 0.0
    %1046 = vmatpush1.msra.mxu0 0.0
    %1047 = vmatprep.subr.mxu0 0.0
    %1048 = vmatpush1.msra.mxu0 0.0
    %1049 = vmatprep.subr.mxu0 0.0
    %1050 = vmatpush1.msra.mxu0 0.0
    %1051 = vmatprep.subr.mxu0 0.0
    %1052 = vmatpush1.msra.mxu0 0.0
    %1053 = vmatprep.subr.mxu0 0.0
    %1054 = vmatpush1.msra.mxu0 %v245
    %1055 = vmatprep.subr.mxu0 0.0
    %1056 = vmatpush1.msra.mxu0 %v244
    %1057 = vmatprep.subr.mxu0 0.0
    %1058 = vmatpush1.msra.mxu0 %v243
    %1059 = vmatprep.subr.mxu0 0.0
    %1060 = vmatpush1.msra.mxu0 %v242
    %1061 = vmatprep.subr.mxu0 0.0
    %1062 = vmatpush2.msra.mxu0 0.0
    %1063 = vmatprep.subr.mxu0 0.0
    %1064 = vmatpush2.msra.mxu0 0.0
    %1065 = vmatprep.subr.mxu0 0.0
    %1066 = vmatpush2.msra.mxu0 0.0
    %1067 = vmatprep.subr.mxu0 0.0
    %1068 = vmatpush2.msra.mxu0 0.0
    %1069 = vmatprep.subr.mxu0 0.0
    %1070 = vmatpush2.msra.mxu0 0.0
    %1071 = vmatprep.subr.mxu0 0.0
    %1072 = vmatpush2.msra.mxu0 0.0
    %1073 = vmatprep.subr.mxu0 0.0
    %1074 = vmatpush2.msra.mxu0 0.0
    %1075 = vmatprep.subr.mxu0 0.0
    %1076 = vmatpush2.msra.mxu0 0.0
    %1077 = vmatprep.subr.mxu0 0.0
    %1078 = vmatpush2.msra.mxu0 0.0
    %1079 = vmatprep.subr.mxu0 0.0
    %1080 = vmatpush2.msra.mxu0 0.0
    %1081 = vmatprep.subr.mxu0 0.0
    %1082 = vmatpush2.msra.mxu0 0.0
    %1083 = vmatprep.subr.mxu0 0.0
    %1084 = vmatpush2.msra.mxu0 0.0
    %1085 = vmatprep.subr.mxu0 0.0
    %1086 = vmatpush2.msra.mxu0 0.0
    %1087 = vmatprep.subr.mxu0 0.0
    %1088 = vmatpush2.msra.mxu0 0.0
    %1089 = vmatprep.subr.mxu0 0.0
    %1090 = vmatpush2.msra.mxu0 0.0
    %1091 = vmatprep.subr.mxu0 0.0
    %1092 = vmatpush2.msra.mxu0 0.0
    %1093 = vmatprep.mubr.f32.mxu0 0.0
    %1094 = vmatmul.mubr.f32.gmra.mxu0 %v1027
    %v1095 = vpop.f32.mrf.mxu0
    %v1096 = vadd.f32 0.0, %v1095
    %v1097 = vpop.f32.mrf.mxu0
    %1098 = vdwg.mxu0
    %v1099 = vadd.f32 %v1026, %v1096
    %v1100 = vxor.u32 %v1099, 2147483648
    %v1101 = vmul.f32 %v1100, 1.442695
    %v1102 = vpow.pop %v1101
    %v1103 = vadd.f32 %v1102, 1.0
    %v1104 = vrcp.pop %v1103
    %v1105 = vmul.f32 1.0, %v1104
    %v1106 = vadd.f32 %v1096, %v335
    %1108 = vrot.lane.b32.xlu0 %v1106, 64
    %v1109 = vpop.permute.xlu0 %1108
    %v1111 = vmul.f32 %v1105, %v1109
    %1113 = vrot.lane.b32.xlu0 %v1111, 64
    %v1114 = vpop.permute.xlu0 %1113
    %v1116 = vadd.f32 %v1026, %v1114
    %v1117 = vtanh.pop %v1116
    %v1118 = vsub.f32 %v1018, %v1117
    %1120 = vrot.lane.b32.xlu0 %v1118, 96
    %v1121 = vpop.permute.xlu0 %1120
    %v1123 = vmul.f32 %v1105, %v1121
    %1125 = vrot.lane.b32.xlu0 %v1123, 32
    %v1126 = vpop.permute.xlu0 %1125
    %v1128 = vadd.f32 %v1117, %v1126
    %1130 = vrot.lane.b32.xlu0 %v1128, 64
    %v1131 = vpop.permute.xlu0 %1130
    %s1133 = scalar_lea.vmem [#allocation2], 56
    %1134 = vst.msk [vmem:[%s1133] sm:$0xff] %vm248, %v1131
    %v1135 = vld [vmem:[#allocation2] sm:$0xff]
    %v1136 = vld [vmem:[#allocation2 + $0x8] sm:$0xff]
    %v1137 = vld [vmem:[#allocation2 + $0x10] sm:$0xff]
    %v1138 = vld [vmem:[#allocation2 + $0x18] sm:$0xff]
    %v1139 = vld [vmem:[#allocation2 + $0x20] sm:$0xff]
    %v1140 = vld [vmem:[#allocation2 + $0x28] sm:$0xff]
    %v1141 = vld [vmem:[#allocation2 + $0x30] sm:$0xff]
    %v1142 = vld [vmem:[#allocation2 + $0x38] sm:$0xff]
    %v1143 = vld [vmem:[%s5] sm:$0xff]
    %v1144 = vld [vmem:[%s5 + $0x8] sm:$0xff]
    %v1145 = vld [vmem:[%s5 + $0x10] sm:$0xff]
    %v1146 = vld [vmem:[%s5 + $0x18] sm:$0xff]
    %v1147 = vld [vmem:[#allocation9] sm:$0x1]
    %v1149 = vlaneseq
    %v1150 = vshrl.u32 %v1149, 7
    %v1151 = vsub.s32 0, %v1150
    %v1152 = vrot.slane %v1147, %v1151
    %v1155 = vsel %vm248, %v1135, 0
    %v1158 = vsel %vm248, %v1136, 0
    %v1161 = vsel %vm248, %v1137, 0
    %v1164 = vsel %vm248, %v1138, 0
    %v1167 = vsel %vm248, %v1139, 0
    %v1170 = vsel %vm248, %v1140, 0
    %v1173 = vsel %vm248, %v1141, 0
    %v1176 = vsel %vm248, %v1142, 0
    %1178 = vmatprep.subr.mxu0 0.0
    %1179 = vmatpush1.msra.mxu0 0.0
    %1180 = vmatprep.subr.mxu0 0.0
    %1181 = vmatpush1.msra.mxu0 0.0
    %1182 = vmatprep.subr.mxu0 0.0
    %1183 = vmatpush1.msra.mxu0 0.0
    %1184 = vmatprep.subr.mxu0 0.0
    %1185 = vmatpush1.msra.mxu0 0.0
    %1186 = vmatprep.subr.mxu0 0.0
    %1187 = vmatpush1.msra.mxu0 0.0
    %1188 = vmatprep.subr.mxu0 0.0
    %1189 = vmatpush1.msra.mxu0 0.0
    %1190 = vmatprep.subr.mxu0 0.0
    %1191 = vmatpush1.msra.mxu0 0.0
    %1192 = vmatprep.subr.mxu0 0.0
    %1193 = vmatpush1.msra.mxu0 0.0
    %1194 = vmatprep.subr.mxu0 0.0
    %1195 = vmatpush1.msra.mxu0 0.0
    %1196 = vmatprep.subr.mxu0 0.0
    %1197 = vmatpush1.msra.mxu0 0.0
    %1198 = vmatprep.subr.mxu0 0.0
    %1199 = vmatpush1.msra.mxu0 0.0
    %1200 = vmatprep.subr.mxu0 0.0
    %1201 = vmatpush1.msra.mxu0 0.0
    %1202 = vmatprep.subr.mxu0 0.0
    %1203 = vmatpush1.msra.mxu0 %v1146
    %1204 = vmatprep.subr.mxu0 0.0
    %1205 = vmatpush1.msra.mxu0 %v1145
    %1206 = vmatprep.subr.mxu0 0.0
    %1207 = vmatpush1.msra.mxu0 %v1144
    %1208 = vmatprep.subr.mxu0 0.0
    %1209 = vmatpush1.msra.mxu0 %v1143
    %1210 = vmatprep.subr.mxu0 0.0
    %1211 = vmatpush2.msra.mxu0 0.0
    %1212 = vmatprep.subr.mxu0 0.0
    %1213 = vmatpush2.msra.mxu0 0.0
    %1214 = vmatprep.subr.mxu0 0.0
    %1215 = vmatpush2.msra.mxu0 0.0
    %1216 = vmatprep.subr.mxu0 0.0
    %1217 = vmatpush2.msra.mxu0 0.0
    %1218 = vmatprep.subr.mxu0 0.0
    %1219 = vmatpush2.msra.mxu0 0.0
    %1220 = vmatprep.subr.mxu0 0.0
    %1221 = vmatpush2.msra.mxu0 0.0
    %1222 = vmatprep.subr.mxu0 0.0
    %1223 = vmatpush2.msra.mxu0 0.0
    %1224 = vmatprep.subr.mxu0 0.0
    %1225 = vmatpush2.msra.mxu0 0.0
    %1226 = vmatprep.subr.mxu0 0.0
    %1227 = vmatpush2.msra.mxu0 0.0
    %1228 = vmatprep.subr.mxu0 0.0
    %1229 = vmatpush2.msra.mxu0 0.0
    %1230 = vmatprep.subr.mxu0 0.0
    %1231 = vmatpush2.msra.mxu0 0.0
    %1232 = vmatprep.subr.mxu0 0.0
    %1233 = vmatpush2.msra.mxu0 0.0
    %1234 = vmatprep.subr.mxu0 0.0
    %1235 = vmatpush2.msra.mxu0 0.0
    %1236 = vmatprep.subr.mxu0 0.0
    %1237 = vmatpush2.msra.mxu0 0.0
    %1238 = vmatprep.subr.mxu0 0.0
    %1239 = vmatpush2.msra.mxu0 0.0
    %1240 = vmatprep.subr.mxu0 0.0
    %1241 = vmatpush2.msra.mxu0 0.0
    %1242 = vmatprep.mubr.f32.mxu0 0.0
    %1243 = vmatmul.mubr.f32.gmra.mxu0 %v1155
    %v1244 = vpop.f32.mrf.mxu0
    %v1245 = vadd.f32 %v1152, %v1244
    %v1246 = vpop.f32.mrf.mxu0
    %1247 = vmatprep.mubr.f32.mxu0 0.0
    %1248 = vmatmul.mubr.f32.gmra.mxu0 %v1158
    %v1249 = vpop.f32.mrf.mxu0
    %v1250 = vadd.f32 %v1152, %v1249
    %v1251 = vpop.f32.mrf.mxu0
    %1252 = vmatprep.mubr.f32.mxu0 0.0
    %1253 = vmatmul.mubr.f32.gmra.mxu0 %v1161
    %v1254 = vpop.f32.mrf.mxu0
    %v1255 = vadd.f32 %v1152, %v1254
    %v1256 = vpop.f32.mrf.mxu0
    %1257 = vmatprep.mubr.f32.mxu0 0.0
    %1258 = vmatmul.mubr.f32.gmra.mxu0 %v1164
    %v1259 = vpop.f32.mrf.mxu0
    %v1260 = vadd.f32 %v1152, %v1259
    %v1261 = vpop.f32.mrf.mxu0
    %1262 = vmatprep.mubr.f32.mxu0 0.0
    %1263 = vmatmul.mubr.f32.gmra.mxu0 %v1167
    %v1264 = vpop.f32.mrf.mxu0
    %v1265 = vadd.f32 %v1152, %v1264
    %v1266 = vpop.f32.mrf.mxu0
    %1267 = vmatprep.mubr.f32.mxu0 0.0
    %1268 = vmatmul.mubr.f32.gmra.mxu0 %v1170
    %v1269 = vpop.f32.mrf.mxu0
    %v1270 = vadd.f32 %v1152, %v1269
    %v1271 = vpop.f32.mrf.mxu0
    %1272 = vmatprep.mubr.f32.mxu0 0.0
    %1273 = vmatmul.mubr.f32.gmra.mxu0 %v1173
    %v1274 = vpop.f32.mrf.mxu0
    %v1275 = vadd.f32 %v1152, %v1274
    %v1276 = vpop.f32.mrf.mxu0
    %1277 = vmatprep.mubr.f32.mxu0 0.0
    %1278 = vmatmul.mubr.f32.gmra.mxu0 %v1176
    %v1279 = vpop.f32.mrf.mxu0
    %v1280 = vadd.f32 %v1152, %v1279
    %v1281 = vpop.f32.mrf.mxu0
    %1282 = vdwg.mxu0
    %1283 = vst.msk [vmem:[#allocation3] sm:$0xff] %vm233, %v1245
    %1284 = vst.msk [vmem:[#allocation3 + $0x8] sm:$0xff] %vm233, %v1250
    %1285 = vst.msk [vmem:[#allocation3 + $0x10] sm:$0xff] %vm233, %v1255
    %1286 = vst.msk [vmem:[#allocation3 + $0x18] sm:$0xff] %vm233, %v1260
    %1287 = vst.msk [vmem:[#allocation3 + $0x20] sm:$0xff] %vm233, %v1265
    %1288 = vst.msk [vmem:[#allocation3 + $0x28] sm:$0xff] %vm233, %v1270
    %1289 = vst.msk [vmem:[#allocation3 + $0x30] sm:$0xff] %vm233, %v1275
    %1290 = vst.msk [vmem:[#allocation3 + $0x38] sm:$0xff] %vm233, %v1280
    %v1291 = vld [vmem:[%s6] sm:$0xff]
    %v1292 = vld [vmem:[%s6 + $0x8] sm:$0xff]
    %v1293 = vld [vmem:[%s6 + $0x10] sm:$0xff]
    %v1294 = vld [vmem:[%s6 + $0x18] sm:$0xff]
    %v1295 = vld [vmem:[#allocation10] sm:$0x1]
    %v1296 = vld [vmem:[#allocation3] sm:$0xff]
    %1297 = vmatprep.subr.mxu0 0.0
    %1298 = vmatpush1.msra.mxu0 0.0
    %1299 = vmatprep.subr.mxu0 0.0
    %1300 = vmatpush1.msra.mxu0 0.0
    %1301 = vmatprep.subr.mxu0 0.0
    %1302 = vmatpush1.msra.mxu0 0.0
    %1303 = vmatprep.subr.mxu0 0.0
    %1304 = vmatpush1.msra.mxu0 0.0
    %1305 = vmatprep.subr.mxu0 0.0
    %1306 = vmatpush1.msra.mxu0 0.0
    %1307 = vmatprep.subr.mxu0 0.0
    %1308 = vmatpush1.msra.mxu0 0.0
    %1309 = vmatprep.subr.mxu0 0.0
    %1310 = vmatpush1.msra.mxu0 0.0
    %1311 = vmatprep.subr.mxu0 0.0
    %1312 = vmatpush1.msra.mxu0 0.0
    %1313 = vmatprep.subr.mxu0 0.0
    %1314 = vmatpush1.msra.mxu0 0.0
    %1315 = vmatprep.subr.mxu0 0.0
    %1316 = vmatpush1.msra.mxu0 0.0
    %1317 = vmatprep.subr.mxu0 0.0
    %1318 = vmatpush1.msra.mxu0 0.0
    %1319 = vmatprep.subr.mxu0 0.0
    %1320 = vmatpush1.msra.mxu0 0.0
    %1321 = vmatprep.subr.mxu0 0.0
    %1322 = vmatpush1.msra.mxu0 %v1294
    %1323 = vmatprep.subr.mxu0 0.0
    %1324 = vmatpush1.msra.mxu0 %v1293
    %1325 = vmatprep.subr.mxu0 0.0
    %1326 = vmatpush1.msra.mxu0 %v1292
    %1327 = vmatprep.subr.mxu0 0.0
    %1328 = vmatpush1.msra.mxu0 %v1291
    %1329 = vmatprep.subr.mxu0 0.0
    %1330 = vmatpush2.msra.mxu0 0.0
    %1331 = vmatprep.subr.mxu0 0.0
    %1332 = vmatpush2.msra.mxu0 0.0
    %1333 = vmatprep.subr.mxu0 0.0
    %1334 = vmatpush2.msra.mxu0 0.0
    %1335 = vmatprep.subr.mxu0 0.0
    %1336 = vmatpush2.msra.mxu0 0.0
    %1337 = vmatprep.subr.mxu0 0.0
    %1338 = vmatpush2.msra.mxu0 0.0
    %1339 = vmatprep.subr.mxu0 0.0
    %1340 = vmatpush2.msra.mxu0 0.0
    %1341 = vmatprep.subr.mxu0 0.0
    %1342 = vmatpush2.msra.mxu0 0.0
    %1343 = vmatprep.subr.mxu0 0.0
    %1344 = vmatpush2.msra.mxu0 0.0
    %1345 = vmatprep.subr.mxu0 0.0
    %1346 = vmatpush2.msra.mxu0 0.0
    %1347 = vmatprep.subr.mxu0 0.0
    %1348 = vmatpush2.msra.mxu0 0.0
    %1349 = vmatprep.subr.mxu0 0.0
    %1350 = vmatpush2.msra.mxu0 0.0
    %1351 = vmatprep.subr.mxu0 0.0
    %1352 = vmatpush2.msra.mxu0 0.0
    %1353 = vmatprep.subr.mxu0 0.0
    %1354 = vmatpush2.msra.mxu0 0.0
    %1355 = vmatprep.subr.mxu0 0.0
    %1356 = vmatpush2.msra.mxu0 0.0
    %1357 = vmatprep.subr.mxu0 0.0
    %1358 = vmatpush2.msra.mxu0 0.0
    %1359 = vmatprep.subr.mxu0 0.0
    %1360 = vmatpush2.msra.mxu0 0.0
    %1361 = vmatprep.mubr.f32.mxu0 0.0
    %1362 = vmatmul.mubr.f32.gmra.mxu0 %v250
    %v1363 = vpop.f32.mrf.mxu0
    %v1364 = vadd.f32 0.0, %v1363
    %v1365 = vpop.f32.mrf.mxu0
    %1366 = vdwg.mxu0
    %v1367 = vadd.f32 %v1296, %v1364
    %v1368 = vxor.u32 %v1367, 2147483648
    %v1369 = vmul.f32 %v1368, 1.442695
    %v1370 = vpow.pop %v1369
    %v1371 = vadd.f32 %v1370, 1.0
    %v1372 = vrcp.pop %v1371
    %v1373 = vmul.f32 1.0, %v1372
    %v1375 = vlaneseq
    %v1376 = vshrl.u32 %v1375, 7
    %v1377 = vsub.s32 0, %v1376
    %v1378 = vrot.slane %v1295, %v1377
    %1379 = vrot.lane.b32.xlu0 %v1378, 64
    %v1380 = vpop.permute.xlu0 %1379
    %v1382 = vadd.f32 %v1364, %v1380
    %1384 = vrot.lane.b32.xlu0 %v1382, 64
    %v1385 = vpop.permute.xlu0 %1384
    %v1387 = vmul.f32 %v1373, %v1385
    %1389 = vrot.lane.b32.xlu0 %v1387, 64
    %v1390 = vpop.permute.xlu0 %1389
    %v1392 = vadd.f32 %v1296, %v1390
    %v1393 = vtanh.pop %v1392
    %v1394 = vsub.f32 0.0, %v1393
    %1396 = vrot.lane.b32.xlu0 %v1394, 96
    %v1397 = vpop.permute.xlu0 %1396
    %v1399 = vmul.f32 %v1373, %v1397
    %1401 = vrot.lane.b32.xlu0 %v1399, 32
    %v1402 = vpop.permute.xlu0 %1401
    %v1404 = vadd.f32 %v1393, %v1402
    %v1405 = vld [vmem:[%s365] sm:$0xff]
    %1407 = vrot.lane.b32.xlu0 %v1404, 64
    %v1408 = vpop.permute.xlu0 %1407
    %v1409 = vsel %vm248, %v1408, 0
    %1411 = vmatprep.subr.mxu0 0.0
    %1412 = vmatpush1.msra.mxu0 0.0
    %1413 = vmatprep.subr.mxu0 0.0
    %1414 = vmatpush1.msra.mxu0 0.0
    %1415 = vmatprep.subr.mxu0 0.0
    %1416 = vmatpush1.msra.mxu0 0.0
    %1417 = vmatprep.subr.mxu0 0.0
    %1418 = vmatpush1.msra.mxu0 0.0
    %1419 = vmatprep.subr.mxu0 0.0
    %1420 = vmatpush1.msra.mxu0 0.0
    %1421 = vmatprep.subr.mxu0 0.0
    %1422 = vmatpush1.msra.mxu0 0.0
    %1423 = vmatprep.subr.mxu0 0.0
    %1424 = vmatpush1.msra.mxu0 0.0
    %1425 = vmatprep.subr.mxu0 0.0
    %1426 = vmatpush1.msra.mxu0 0.0
    %1427 = vmatprep.subr.mxu0 0.0
    %1428 = vmatpush1.msra.mxu0 0.0
    %1429 = vmatprep.subr.mxu0 0.0
    %1430 = vmatpush1.msra.mxu0 0.0
    %1431 = vmatprep.subr.mxu0 0.0
    %1432 = vmatpush1.msra.mxu0 0.0
    %1433 = vmatprep.subr.mxu0 0.0
    %1434 = vmatpush1.msra.mxu0 0.0
    %1435 = vmatprep.subr.mxu0 0.0
    %1436 = vmatpush1.msra.mxu0 %v1294
    %1437 = vmatprep.subr.mxu0 0.0
    %1438 = vmatpush1.msra.mxu0 %v1293
    %1439 = vmatprep.subr.mxu0 0.0
    %1440 = vmatpush1.msra.mxu0 %v1292
    %1441 = vmatprep.subr.mxu0 0.0
    %1442 = vmatpush1.msra.mxu0 %v1291
    %1443 = vmatprep.subr.mxu0 0.0
    %1444 = vmatpush2.msra.mxu0 0.0
    %1445 = vmatprep.subr.mxu0 0.0
    %1446 = vmatpush2.msra.mxu0 0.0
    %1447 = vmatprep.subr.mxu0 0.0
    %1448 = vmatpush2.msra.mxu0 0.0
    %1449 = vmatprep.subr.mxu0 0.0
    %1450 = vmatpush2.msra.mxu0 0.0
    %1451 = vmatprep.subr.mxu0 0.0
    %1452 = vmatpush2.msra.mxu0 0.0
    %1453 = vmatprep.subr.mxu0 0.0
    %1454 = vmatpush2.msra.mxu0 0.0
    %1455 = vmatprep.subr.mxu0 0.0
    %1456 = vmatpush2.msra.mxu0 0.0
    %1457 = vmatprep.subr.mxu0 0.0
    %1458 = vmatpush2.msra.mxu0 0.0
    %1459 = vmatprep.subr.mxu0 0.0
    %1460 = vmatpush2.msra.mxu0 0.0
    %1461 = vmatprep.subr.mxu0 0.0
    %1462 = vmatpush2.msra.mxu0 0.0
    %1463 = vmatprep.subr.mxu0 0.0
    %1464 = vmatpush2.msra.mxu0 0.0
    %1465 = vmatprep.subr.mxu0 0.0
    %1466 = vmatpush2.msra.mxu0 0.0
    %1467 = vmatprep.subr.mxu0 0.0
    %1468 = vmatpush2.msra.mxu0 0.0
    %1469 = vmatprep.subr.mxu0 0.0
    %1470 = vmatpush2.msra.mxu0 0.0
    %1471 = vmatprep.subr.mxu0 0.0
    %1472 = vmatpush2.msra.mxu0 0.0
    %1473 = vmatprep.subr.mxu0 0.0
    %1474 = vmatpush2.msra.mxu0 0.0
    %1475 = vmatprep.mubr.f32.mxu0 0.0
    %1476 = vmatmul.mubr.f32.gmra.mxu0 %v1409
    %v1477 = vpop.f32.mrf.mxu0
    %v1478 = vadd.f32 0.0, %v1477
    %v1479 = vpop.f32.mrf.mxu0
    %1480 = vdwg.mxu0
    %v1481 = vadd.f32 %v1405, %v1478
    %v1482 = vxor.u32 %v1481, 2147483648
    %v1483 = vmul.f32 %v1482, 1.442695
    %v1484 = vpow.pop %v1483
    %v1485 = vadd.f32 %v1484, 1.0
    %v1486 = vrcp.pop %v1485
    %v1487 = vmul.f32 1.0, %v1486
    %v1488 = vadd.f32 %v1478, %v1380
    %1490 = vrot.lane.b32.xlu0 %v1488, 64
    %v1491 = vpop.permute.xlu0 %1490
    %v1493 = vmul.f32 %v1487, %v1491
    %1495 = vrot.lane.b32.xlu0 %v1493, 64
    %v1496 = vpop.permute.xlu0 %1495
    %v1498 = vadd.f32 %v1405, %v1496
    %v1499 = vtanh.pop %v1498
    %v1500 = vsub.f32 %v1404, %v1499
    %1502 = vrot.lane.b32.xlu0 %v1500, 96
    %v1503 = vpop.permute.xlu0 %1502
    %v1505 = vmul.f32 %v1487, %v1503
    %1507 = vrot.lane.b32.xlu0 %v1505, 32
    %v1508 = vpop.permute.xlu0 %1507
    %v1510 = vadd.f32 %v1499, %v1508
    %v1511 = vld [vmem:[%s475] sm:$0xff]
    %1513 = vrot.lane.b32.xlu0 %v1510, 64
    %v1514 = vpop.permute.xlu0 %1513
    %v1515 = vsel %vm248, %v1514, 0
    %1517 = vmatprep.subr.mxu0 0.0
    %1518 = vmatpush1.msra.mxu0 0.0
    %1519 = vmatprep.subr.mxu0 0.0
    %1520 = vmatpush1.msra.mxu0 0.0
    %1521 = vmatprep.subr.mxu0 0.0
    %1522 = vmatpush1.msra.mxu0 0.0
    %1523 = vmatprep.subr.mxu0 0.0
    %1524 = vmatpush1.msra.mxu0 0.0
    %1525 = vmatprep.subr.mxu0 0.0
    %1526 = vmatpush1.msra.mxu0 0.0
    %1527 = vmatprep.subr.mxu0 0.0
    %1528 = vmatpush1.msra.mxu0 0.0
    %1529 = vmatprep.subr.mxu0 0.0
    %1530 = vmatpush1.msra.mxu0 0.0
    %1531 = vmatprep.subr.mxu0 0.0
    %1532 = vmatpush1.msra.mxu0 0.0
    %1533 = vmatprep.subr.mxu0 0.0
    %1534 = vmatpush1.msra.mxu0 0.0
    %1535 = vmatprep.subr.mxu0 0.0
    %1536 = vmatpush1.msra.mxu0 0.0
    %1537 = vmatprep.subr.mxu0 0.0
    %1538 = vmatpush1.msra.mxu0 0.0
    %1539 = vmatprep.subr.mxu0 0.0
    %1540 = vmatpush1.msra.mxu0 0.0
    %1541 = vmatprep.subr.mxu0 0.0
    %1542 = vmatpush1.msra.mxu0 %v1294
    %1543 = vmatprep.subr.mxu0 0.0
    %1544 = vmatpush1.msra.mxu0 %v1293
    %1545 = vmatprep.subr.mxu0 0.0
    %1546 = vmatpush1.msra.mxu0 %v1292
    %1547 = vmatprep.subr.mxu0 0.0
    %1548 = vmatpush1.msra.mxu0 %v1291
    %1549 = vmatprep.subr.mxu0 0.0
    %1550 = vmatpush2.msra.mxu0 0.0
    %1551 = vmatprep.subr.mxu0 0.0
    %1552 = vmatpush2.msra.mxu0 0.0
    %1553 = vmatprep.subr.mxu0 0.0
    %1554 = vmatpush2.msra.mxu0 0.0
    %1555 = vmatprep.subr.mxu0 0.0
    %1556 = vmatpush2.msra.mxu0 0.0
    %1557 = vmatprep.subr.mxu0 0.0
    %1558 = vmatpush2.msra.mxu0 0.0
    %1559 = vmatprep.subr.mxu0 0.0
    %1560 = vmatpush2.msra.mxu0 0.0
    %1561 = vmatprep.subr.mxu0 0.0
    %1562 = vmatpush2.msra.mxu0 0.0
    %1563 = vmatprep.subr.mxu0 0.0
    %1564 = vmatpush2.msra.mxu0 0.0
    %1565 = vmatprep.subr.mxu0 0.0
    %1566 = vmatpush2.msra.mxu0 0.0
    %1567 = vmatprep.subr.mxu0 0.0
    %1568 = vmatpush2.msra.mxu0 0.0
    %1569 = vmatprep.subr.mxu0 0.0
    %1570 = vmatpush2.msra.mxu0 0.0
    %1571 = vmatprep.subr.mxu0 0.0
    %1572 = vmatpush2.msra.mxu0 0.0
    %1573 = vmatprep.subr.mxu0 0.0
    %1574 = vmatpush2.msra.mxu0 0.0
    %1575 = vmatprep.subr.mxu0 0.0
    %1576 = vmatpush2.msra.mxu0 0.0
    %1577 = vmatprep.subr.mxu0 0.0
    %1578 = vmatpush2.msra.mxu0 0.0
    %1579 = vmatprep.subr.mxu0 0.0
    %1580 = vmatpush2.msra.mxu0 0.0
    %1581 = vmatprep.mubr.f32.mxu0 0.0
    %1582 = vmatmul.mubr.f32.gmra.mxu0 %v1515
    %v1583 = vpop.f32.mrf.mxu0
    %v1584 = vadd.f32 0.0, %v1583
    %v1585 = vpop.f32.mrf.mxu0
    %1586 = vdwg.mxu0
    %v1587 = vadd.f32 %v1511, %v1584
    %v1588 = vxor.u32 %v1587, 2147483648
    %v1589 = vmul.f32 %v1588, 1.442695
    %v1590 = vpow.pop %v1589
    %v1591 = vadd.f32 %v1590, 1.0
    %v1592 = vrcp.pop %v1591
    %v1593 = vmul.f32 1.0, %v1592
    %v1594 = vadd.f32 %v1584, %v1380
    %1596 = vrot.lane.b32.xlu0 %v1594, 64
    %v1597 = vpop.permute.xlu0 %1596
    %v1599 = vmul.f32 %v1593, %v1597
    %1601 = vrot.lane.b32.xlu0 %v1599, 64
    %v1602 = vpop.permute.xlu0 %1601
    %v1604 = vadd.f32 %v1511, %v1602
    %v1605 = vtanh.pop %v1604
    %v1606 = vsub.f32 %v1510, %v1605
    %1608 = vrot.lane.b32.xlu0 %v1606, 96
    %v1609 = vpop.permute.xlu0 %1608
    %v1611 = vmul.f32 %v1593, %v1609
    %1613 = vrot.lane.b32.xlu0 %v1611, 32
    %v1614 = vpop.permute.xlu0 %1613
    %v1616 = vadd.f32 %v1605, %v1614
    %v1617 = vld [vmem:[%s585] sm:$0xff]
    %1619 = vrot.lane.b32.xlu0 %v1616, 64
    %v1620 = vpop.permute.xlu0 %1619
    %v1621 = vsel %vm248, %v1620, 0
    %1623 = vmatprep.subr.mxu0 0.0
    %1624 = vmatpush1.msra.mxu0 0.0
    %1625 = vmatprep.subr.mxu0 0.0
    %1626 = vmatpush1.msra.mxu0 0.0
    %1627 = vmatprep.subr.mxu0 0.0
    %1628 = vmatpush1.msra.mxu0 0.0
    %1629 = vmatprep.subr.mxu0 0.0
    %1630 = vmatpush1.msra.mxu0 0.0
    %1631 = vmatprep.subr.mxu0 0.0
    %1632 = vmatpush1.msra.mxu0 0.0
    %1633 = vmatprep.subr.mxu0 0.0
    %1634 = vmatpush1.msra.mxu0 0.0
    %1635 = vmatprep.subr.mxu0 0.0
    %1636 = vmatpush1.msra.mxu0 0.0
    %1637 = vmatprep.subr.mxu0 0.0
    %1638 = vmatpush1.msra.mxu0 0.0
    %1639 = vmatprep.subr.mxu0 0.0
    %1640 = vmatpush1.msra.mxu0 0.0
    %1641 = vmatprep.subr.mxu0 0.0
    %1642 = vmatpush1.msra.mxu0 0.0
    %1643 = vmatprep.subr.mxu0 0.0
    %1644 = vmatpush1.msra.mxu0 0.0
    %1645 = vmatprep.subr.mxu0 0.0
    %1646 = vmatpush1.msra.mxu0 0.0
    %1647 = vmatprep.subr.mxu0 0.0
    %1648 = vmatpush1.msra.mxu0 %v1294
    %1649 = vmatprep.subr.mxu0 0.0
    %1650 = vmatpush1.msra.mxu0 %v1293
    %1651 = vmatprep.subr.mxu0 0.0
    %1652 = vmatpush1.msra.mxu0 %v1292
    %1653 = vmatprep.subr.mxu0 0.0
    %1654 = vmatpush1.msra.mxu0 %v1291
    %1655 = vmatprep.subr.mxu0 0.0
    %1656 = vmatpush2.msra.mxu0 0.0
    %1657 = vmatprep.subr.mxu0 0.0
    %1658 = vmatpush2.msra.mxu0 0.0
    %1659 = vmatprep.subr.mxu0 0.0
    %1660 = vmatpush2.msra.mxu0 0.0
    %1661 = vmatprep.subr.mxu0 0.0
    %1662 = vmatpush2.msra.mxu0 0.0
    %1663 = vmatprep.subr.mxu0 0.0
    %1664 = vmatpush2.msra.mxu0 0.0
    %1665 = vmatprep.subr.mxu0 0.0
    %1666 = vmatpush2.msra.mxu0 0.0
    %1667 = vmatprep.subr.mxu0 0.0
    %1668 = vmatpush2.msra.mxu0 0.0
    %1669 = vmatprep.subr.mxu0 0.0
    %1670 = vmatpush2.msra.mxu0 0.0
    %1671 = vmatprep.subr.mxu0 0.0
    %1672 = vmatpush2.msra.mxu0 0.0
    %1673 = vmatprep.subr.mxu0 0.0
    %1674 = vmatpush2.msra.mxu0 0.0
    %1675 = vmatprep.subr.mxu0 0.0
    %1676 = vmatpush2.msra.mxu0 0.0
    %1677 = vmatprep.subr.mxu0 0.0
    %1678 = vmatpush2.msra.mxu0 0.0
    %1679 = vmatprep.subr.mxu0 0.0
    %1680 = vmatpush2.msra.mxu0 0.0
    %1681 = vmatprep.subr.mxu0 0.0
    %1682 = vmatpush2.msra.mxu0 0.0
    %1683 = vmatprep.subr.mxu0 0.0
    %1684 = vmatpush2.msra.mxu0 0.0
    %1685 = vmatprep.subr.mxu0 0.0
    %1686 = vmatpush2.msra.mxu0 0.0
    %1687 = vmatprep.mubr.f32.mxu0 0.0
    %1688 = vmatmul.mubr.f32.gmra.mxu0 %v1621
    %v1689 = vpop.f32.mrf.mxu0
    %v1690 = vadd.f32 0.0, %v1689
    %v1691 = vpop.f32.mrf.mxu0
    %1692 = vdwg.mxu0
    %v1693 = vadd.f32 %v1617, %v1690
    %v1694 = vxor.u32 %v1693, 2147483648
    %v1695 = vmul.f32 %v1694, 1.442695
    %v1696 = vpow.pop %v1695
    %v1697 = vadd.f32 %v1696, 1.0
    %v1698 = vrcp.pop %v1697
    %v1699 = vmul.f32 1.0, %v1698
    %v1700 = vadd.f32 %v1690, %v1380
    %1702 = vrot.lane.b32.xlu0 %v1700, 64
    %v1703 = vpop.permute.xlu0 %1702
    %v1705 = vmul.f32 %v1699, %v1703
    %1707 = vrot.lane.b32.xlu0 %v1705, 64
    %v1708 = vpop.permute.xlu0 %1707
    %v1710 = vadd.f32 %v1617, %v1708
    %v1711 = vtanh.pop %v1710
    %v1712 = vsub.f32 %v1616, %v1711
    %1714 = vrot.lane.b32.xlu0 %v1712, 96
    %v1715 = vpop.permute.xlu0 %1714
    %v1717 = vmul.f32 %v1699, %v1715
    %1719 = vrot.lane.b32.xlu0 %v1717, 32
    %v1720 = vpop.permute.xlu0 %1719
    %v1722 = vadd.f32 %v1711, %v1720
    %v1723 = vld [vmem:[%s695] sm:$0xff]
    %1725 = vrot.lane.b32.xlu0 %v1722, 64
    %v1726 = vpop.permute.xlu0 %1725
    %v1727 = vsel %vm248, %v1726, 0
    %1729 = vmatprep.subr.mxu0 0.0
    %1730 = vmatpush1.msra.mxu0 0.0
    %1731 = vmatprep.subr.mxu0 0.0
    %1732 = vmatpush1.msra.mxu0 0.0
    %1733 = vmatprep.subr.mxu0 0.0
    %1734 = vmatpush1.msra.mxu0 0.0
    %1735 = vmatprep.subr.mxu0 0.0
    %1736 = vmatpush1.msra.mxu0 0.0
    %1737 = vmatprep.subr.mxu0 0.0
    %1738 = vmatpush1.msra.mxu0 0.0
    %1739 = vmatprep.subr.mxu0 0.0
    %1740 = vmatpush1.msra.mxu0 0.0
    %1741 = vmatprep.subr.mxu0 0.0
    %1742 = vmatpush1.msra.mxu0 0.0
    %1743 = vmatprep.subr.mxu0 0.0
    %1744 = vmatpush1.msra.mxu0 0.0
    %1745 = vmatprep.subr.mxu0 0.0
    %1746 = vmatpush1.msra.mxu0 0.0
    %1747 = vmatprep.subr.mxu0 0.0
    %1748 = vmatpush1.msra.mxu0 0.0
    %1749 = vmatprep.subr.mxu0 0.0
    %1750 = vmatpush1.msra.mxu0 0.0
    %1751 = vmatprep.subr.mxu0 0.0
    %1752 = vmatpush1.msra.mxu0 0.0
    %1753 = vmatprep.subr.mxu0 0.0
    %1754 = vmatpush1.msra.mxu0 %v1294
    %1755 = vmatprep.subr.mxu0 0.0
    %1756 = vmatpush1.msra.mxu0 %v1293
    %1757 = vmatprep.subr.mxu0 0.0
    %1758 = vmatpush1.msra.mxu0 %v1292
    %1759 = vmatprep.subr.mxu0 0.0
    %1760 = vmatpush1.msra.mxu0 %v1291
    %1761 = vmatprep.subr.mxu0 0.0
    %1762 = vmatpush2.msra.mxu0 0.0
    %1763 = vmatprep.subr.mxu0 0.0
    %1764 = vmatpush2.msra.mxu0 0.0
    %1765 = vmatprep.subr.mxu0 0.0
    %1766 = vmatpush2.msra.mxu0 0.0
    %1767 = vmatprep.subr.mxu0 0.0
    %1768 = vmatpush2.msra.mxu0 0.0
    %1769 = vmatprep.subr.mxu0 0.0
    %1770 = vmatpush2.msra.mxu0 0.0
    %1771 = vmatprep.subr.mxu0 0.0
    %1772 = vmatpush2.msra.mxu0 0.0
    %1773 = vmatprep.subr.mxu0 0.0
    %1774 = vmatpush2.msra.mxu0 0.0
    %1775 = vmatprep.subr.mxu0 0.0
    %1776 = vmatpush2.msra.mxu0 0.0
    %1777 = vmatprep.subr.mxu0 0.0
    %1778 = vmatpush2.msra.mxu0 0.0
    %1779 = vmatprep.subr.mxu0 0.0
    %1780 = vmatpush2.msra.mxu0 0.0
    %1781 = vmatprep.subr.mxu0 0.0
    %1782 = vmatpush2.msra.mxu0 0.0
    %1783 = vmatprep.subr.mxu0 0.0
    %1784 = vmatpush2.msra.mxu0 0.0
    %1785 = vmatprep.subr.mxu0 0.0
    %1786 = vmatpush2.msra.mxu0 0.0
    %1787 = vmatprep.subr.mxu0 0.0
    %1788 = vmatpush2.msra.mxu0 0.0
    %1789 = vmatprep.subr.mxu0 0.0
    %1790 = vmatpush2.msra.mxu0 0.0
    %1791 = vmatprep.subr.mxu0 0.0
    %1792 = vmatpush2.msra.mxu0 0.0
    %1793 = vmatprep.mubr.f32.mxu0 0.0
    %1794 = vmatmul.mubr.f32.gmra.mxu0 %v1727
    %v1795 = vpop.f32.mrf.mxu0
    %v1796 = vadd.f32 0.0, %v1795
    %v1797 = vpop.f32.mrf.mxu0
    %1798 = vdwg.mxu0
    %v1799 = vadd.f32 %v1723, %v1796
    %v1800 = vxor.u32 %v1799, 2147483648
    %v1801 = vmul.f32 %v1800, 1.442695
    %v1802 = vpow.pop %v1801
    %v1803 = vadd.f32 %v1802, 1.0
    %v1804 = vrcp.pop %v1803
    %v1805 = vmul.f32 1.0, %v1804
    %v1806 = vadd.f32 %v1796, %v1380
    %1808 = vrot.lane.b32.xlu0 %v1806, 64
    %v1809 = vpop.permute.xlu0 %1808
    %v1811 = vmul.f32 %v1805, %v1809
    %1813 = vrot.lane.b32.xlu0 %v1811, 64
    %v1814 = vpop.permute.xlu0 %1813
    %v1816 = vadd.f32 %v1723, %v1814
    %v1817 = vtanh.pop %v1816
    %v1818 = vsub.f32 %v1722, %v1817
    %1820 = vrot.lane.b32.xlu0 %v1818, 96
    %v1821 = vpop.permute.xlu0 %1820
    %v1823 = vmul.f32 %v1805, %v1821
    %1825 = vrot.lane.b32.xlu0 %v1823, 32
    %v1826 = vpop.permute.xlu0 %1825
    %v1828 = vadd.f32 %v1817, %v1826
    %v1829 = vld [vmem:[%s805] sm:$0xff]
    %1831 = vrot.lane.b32.xlu0 %v1828, 64
    %v1832 = vpop.permute.xlu0 %1831
    %v1833 = vsel %vm248, %v1832, 0
    %1835 = vmatprep.subr.mxu0 0.0
    %1836 = vmatpush1.msra.mxu0 0.0
    %1837 = vmatprep.subr.mxu0 0.0
    %1838 = vmatpush1.msra.mxu0 0.0
    %1839 = vmatprep.subr.mxu0 0.0
    %1840 = vmatpush1.msra.mxu0 0.0
    %1841 = vmatprep.subr.mxu0 0.0
    %1842 = vmatpush1.msra.mxu0 0.0
    %1843 = vmatprep.subr.mxu0 0.0
    %1844 = vmatpush1.msra.mxu0 0.0
    %1845 = vmatprep.subr.mxu0 0.0
    %1846 = vmatpush1.msra.mxu0 0.0
    %1847 = vmatprep.subr.mxu0 0.0
    %1848 = vmatpush1.msra.mxu0 0.0
    %1849 = vmatprep.subr.mxu0 0.0
    %1850 = vmatpush1.msra.mxu0 0.0
    %1851 = vmatprep.subr.mxu0 0.0
    %1852 = vmatpush1.msra.mxu0 0.0
    %1853 = vmatprep.subr.mxu0 0.0
    %1854 = vmatpush1.msra.mxu0 0.0
    %1855 = vmatprep.subr.mxu0 0.0
    %1856 = vmatpush1.msra.mxu0 0.0
    %1857 = vmatprep.subr.mxu0 0.0
    %1858 = vmatpush1.msra.mxu0 0.0
    %1859 = vmatprep.subr.mxu0 0.0
    %1860 = vmatpush1.msra.mxu0 %v1294
    %1861 = vmatprep.subr.mxu0 0.0
    %1862 = vmatpush1.msra.mxu0 %v1293
    %1863 = vmatprep.subr.mxu0 0.0
    %1864 = vmatpush1.msra.mxu0 %v1292
    %1865 = vmatprep.subr.mxu0 0.0
    %1866 = vmatpush1.msra.mxu0 %v1291
    %1867 = vmatprep.subr.mxu0 0.0
    %1868 = vmatpush2.msra.mxu0 0.0
    %1869 = vmatprep.subr.mxu0 0.0
    %1870 = vmatpush2.msra.mxu0 0.0
    %1871 = vmatprep.subr.mxu0 0.0
    %1872 = vmatpush2.msra.mxu0 0.0
    %1873 = vmatprep.subr.mxu0 0.0
    %1874 = vmatpush2.msra.mxu0 0.0
    %1875 = vmatprep.subr.mxu0 0.0
    %1876 = vmatpush2.msra.mxu0 0.0
    %1877 = vmatprep.subr.mxu0 0.0
    %1878 = vmatpush2.msra.mxu0 0.0
    %1879 = vmatprep.subr.mxu0 0.0
    %1880 = vmatpush2.msra.mxu0 0.0
    %1881 = vmatprep.subr.mxu0 0.0
    %1882 = vmatpush2.msra.mxu0 0.0
    %1883 = vmatprep.subr.mxu0 0.0
    %1884 = vmatpush2.msra.mxu0 0.0
    %1885 = vmatprep.subr.mxu0 0.0
    %1886 = vmatpush2.msra.mxu0 0.0
    %1887 = vmatprep.subr.mxu0 0.0
    %1888 = vmatpush2.msra.mxu0 0.0
    %1889 = vmatprep.subr.mxu0 0.0
    %1890 = vmatpush2.msra.mxu0 0.0
    %1891 = vmatprep.subr.mxu0 0.0
    %1892 = vmatpush2.msra.mxu0 0.0
    %1893 = vmatprep.subr.mxu0 0.0
    %1894 = vmatpush2.msra.mxu0 0.0
    %1895 = vmatprep.subr.mxu0 0.0
    %1896 = vmatpush2.msra.mxu0 0.0
    %1897 = vmatprep.subr.mxu0 0.0
    %1898 = vmatpush2.msra.mxu0 0.0
    %1899 = vmatprep.mubr.f32.mxu0 0.0
    %1900 = vmatmul.mubr.f32.gmra.mxu0 %v1833
    %v1901 = vpop.f32.mrf.mxu0
    %v1902 = vadd.f32 0.0, %v1901
    %v1903 = vpop.f32.mrf.mxu0
    %1904 = vdwg.mxu0
    %v1905 = vadd.f32 %v1829, %v1902
    %v1906 = vxor.u32 %v1905, 2147483648
    %v1907 = vmul.f32 %v1906, 1.442695
    %v1908 = vpow.pop %v1907
    %v1909 = vadd.f32 %v1908, 1.0
    %v1910 = vrcp.pop %v1909
    %v1911 = vmul.f32 1.0, %v1910
    %v1912 = vadd.f32 %v1902, %v1380
    %1914 = vrot.lane.b32.xlu0 %v1912, 64
    %v1915 = vpop.permute.xlu0 %1914
    %v1917 = vmul.f32 %v1911, %v1915
    %1919 = vrot.lane.b32.xlu0 %v1917, 64
    %v1920 = vpop.permute.xlu0 %1919
    %v1922 = vadd.f32 %v1829, %v1920
    %v1923 = vtanh.pop %v1922
    %v1924 = vsub.f32 %v1828, %v1923
    %1926 = vrot.lane.b32.xlu0 %v1924, 96
    %v1927 = vpop.permute.xlu0 %1926
    %v1929 = vmul.f32 %v1911, %v1927
    %1931 = vrot.lane.b32.xlu0 %v1929, 32
    %v1932 = vpop.permute.xlu0 %1931
    %v1934 = vadd.f32 %v1923, %v1932
    %v1935 = vld [vmem:[%s915] sm:$0xff]
    %1937 = vrot.lane.b32.xlu0 %v1934, 64
    %v1938 = vpop.permute.xlu0 %1937
    %v1939 = vsel %vm248, %v1938, 0
    %1941 = vmatprep.subr.mxu0 0.0
    %1942 = vmatpush1.msra.mxu0 0.0
    %1943 = vmatprep.subr.mxu0 0.0
    %1944 = vmatpush1.msra.mxu0 0.0
    %1945 = vmatprep.subr.mxu0 0.0
    %1946 = vmatpush1.msra.mxu0 0.0
    %1947 = vmatprep.subr.mxu0 0.0
    %1948 = vmatpush1.msra.mxu0 0.0
    %1949 = vmatprep.subr.mxu0 0.0
    %1950 = vmatpush1.msra.mxu0 0.0
    %1951 = vmatprep.subr.mxu0 0.0
    %1952 = vmatpush1.msra.mxu0 0.0
    %1953 = vmatprep.subr.mxu0 0.0
    %1954 = vmatpush1.msra.mxu0 0.0
    %1955 = vmatprep.subr.mxu0 0.0
    %1956 = vmatpush1.msra.mxu0 0.0
    %1957 = vmatprep.subr.mxu0 0.0
    %1958 = vmatpush1.msra.mxu0 0.0
    %1959 = vmatprep.subr.mxu0 0.0
    %1960 = vmatpush1.msra.mxu0 0.0
    %1961 = vmatprep.subr.mxu0 0.0
    %1962 = vmatpush1.msra.mxu0 0.0
    %1963 = vmatprep.subr.mxu0 0.0
    %1964 = vmatpush1.msra.mxu0 0.0
    %1965 = vmatprep.subr.mxu0 0.0
    %1966 = vmatpush1.msra.mxu0 %v1294
    %1967 = vmatprep.subr.mxu0 0.0
    %1968 = vmatpush1.msra.mxu0 %v1293
    %1969 = vmatprep.subr.mxu0 0.0
    %1970 = vmatpush1.msra.mxu0 %v1292
    %1971 = vmatprep.subr.mxu0 0.0
    %1972 = vmatpush1.msra.mxu0 %v1291
    %1973 = vmatprep.subr.mxu0 0.0
    %1974 = vmatpush2.msra.mxu0 0.0
    %1975 = vmatprep.subr.mxu0 0.0
    %1976 = vmatpush2.msra.mxu0 0.0
    %1977 = vmatprep.subr.mxu0 0.0
    %1978 = vmatpush2.msra.mxu0 0.0
    %1979 = vmatprep.subr.mxu0 0.0
    %1980 = vmatpush2.msra.mxu0 0.0
    %1981 = vmatprep.subr.mxu0 0.0
    %1982 = vmatpush2.msra.mxu0 0.0
    %1983 = vmatprep.subr.mxu0 0.0
    %1984 = vmatpush2.msra.mxu0 0.0
    %1985 = vmatprep.subr.mxu0 0.0
    %1986 = vmatpush2.msra.mxu0 0.0
    %1987 = vmatprep.subr.mxu0 0.0
    %1988 = vmatpush2.msra.mxu0 0.0
    %1989 = vmatprep.subr.mxu0 0.0
    %1990 = vmatpush2.msra.mxu0 0.0
    %1991 = vmatprep.subr.mxu0 0.0
    %1992 = vmatpush2.msra.mxu0 0.0
    %1993 = vmatprep.subr.mxu0 0.0
    %1994 = vmatpush2.msra.mxu0 0.0
    %1995 = vmatprep.subr.mxu0 0.0
    %1996 = vmatpush2.msra.mxu0 0.0
    %1997 = vmatprep.subr.mxu0 0.0
    %1998 = vmatpush2.msra.mxu0 0.0
    %1999 = vmatprep.subr.mxu0 0.0
    %2000 = vmatpush2.msra.mxu0 0.0
    %2001 = vmatprep.subr.mxu0 0.0
    %2002 = vmatpush2.msra.mxu0 0.0
    %2003 = vmatprep.subr.mxu0 0.0
    %2004 = vmatpush2.msra.mxu0 0.0
    %2005 = vmatprep.mubr.f32.mxu0 0.0
    %2006 = vmatmul.mubr.f32.gmra.mxu0 %v1939
    %v2007 = vpop.f32.mrf.mxu0
    %v2008 = vadd.f32 0.0, %v2007
    %v2009 = vpop.f32.mrf.mxu0
    %2010 = vdwg.mxu0
    %v2011 = vadd.f32 %v1935, %v2008
    %v2012 = vxor.u32 %v2011, 2147483648
    %v2013 = vmul.f32 %v2012, 1.442695
    %v2014 = vpow.pop %v2013
    %v2015 = vadd.f32 %v2014, 1.0
    %v2016 = vrcp.pop %v2015
    %v2017 = vmul.f32 1.0, %v2016
    %v2018 = vadd.f32 %v2008, %v1380
    %2020 = vrot.lane.b32.xlu0 %v2018, 64
    %v2021 = vpop.permute.xlu0 %2020
    %v2023 = vmul.f32 %v2017, %v2021
    %2025 = vrot.lane.b32.xlu0 %v2023, 64
    %v2026 = vpop.permute.xlu0 %2025
    %v2028 = vadd.f32 %v1935, %v2026
    %v2029 = vtanh.pop %v2028
    %v2030 = vsub.f32 %v1934, %v2029
    %2032 = vrot.lane.b32.xlu0 %v2030, 96
    %v2033 = vpop.permute.xlu0 %2032
    %v2035 = vmul.f32 %v2017, %v2033
    %2037 = vrot.lane.b32.xlu0 %v2035, 32
    %v2038 = vpop.permute.xlu0 %2037
    %v2040 = vadd.f32 %v2029, %v2038
    %v2041 = vld [vmem:[%s1025] sm:$0xff]
    %2043 = vrot.lane.b32.xlu0 %v2040, 64
    %v2044 = vpop.permute.xlu0 %2043
    %v2045 = vsel %vm248, %v2044, 0
    %2047 = vmatprep.subr.mxu0 0.0
    %2048 = vmatpush1.msra.mxu0 0.0
    %2049 = vmatprep.subr.mxu0 0.0
    %2050 = vmatpush1.msra.mxu0 0.0
    %2051 = vmatprep.subr.mxu0 0.0
    %2052 = vmatpush1.msra.mxu0 0.0
    %2053 = vmatprep.subr.mxu0 0.0
    %2054 = vmatpush1.msra.mxu0 0.0
    %2055 = vmatprep.subr.mxu0 0.0
    %2056 = vmatpush1.msra.mxu0 0.0
    %2057 = vmatprep.subr.mxu0 0.0
    %2058 = vmatpush1.msra.mxu0 0.0
    %2059 = vmatprep.subr.mxu0 0.0
    %2060 = vmatpush1.msra.mxu0 0.0
    %2061 = vmatprep.subr.mxu0 0.0
    %2062 = vmatpush1.msra.mxu0 0.0
    %2063 = vmatprep.subr.mxu0 0.0
    %2064 = vmatpush1.msra.mxu0 0.0
    %2065 = vmatprep.subr.mxu0 0.0
    %2066 = vmatpush1.msra.mxu0 0.0
    %2067 = vmatprep.subr.mxu0 0.0
    %2068 = vmatpush1.msra.mxu0 0.0
    %2069 = vmatprep.subr.mxu0 0.0
    %2070 = vmatpush1.msra.mxu0 0.0
    %2071 = vmatprep.subr.mxu0 0.0
    %2072 = vmatpush1.msra.mxu0 %v1294
    %2073 = vmatprep.subr.mxu0 0.0
    %2074 = vmatpush1.msra.mxu0 %v1293
    %2075 = vmatprep.subr.mxu0 0.0
    %2076 = vmatpush1.msra.mxu0 %v1292
    %2077 = vmatprep.subr.mxu0 0.0
    %2078 = vmatpush1.msra.mxu0 %v1291
    %2079 = vmatprep.subr.mxu0 0.0
    %2080 = vmatpush2.msra.mxu0 0.0
    %2081 = vmatprep.subr.mxu0 0.0
    %2082 = vmatpush2.msra.mxu0 0.0
    %2083 = vmatprep.subr.mxu0 0.0
    %2084 = vmatpush2.msra.mxu0 0.0
    %2085 = vmatprep.subr.mxu0 0.0
    %2086 = vmatpush2.msra.mxu0 0.0
    %2087 = vmatprep.subr.mxu0 0.0
    %2088 = vmatpush2.msra.mxu0 0.0
    %2089 = vmatprep.subr.mxu0 0.0
    %2090 = vmatpush2.msra.mxu0 0.0
    %2091 = vmatprep.subr.mxu0 0.0
    %2092 = vmatpush2.msra.mxu0 0.0
    %2093 = vmatprep.subr.mxu0 0.0
    %2094 = vmatpush2.msra.mxu0 0.0
    %2095 = vmatprep.subr.mxu0 0.0
    %2096 = vmatpush2.msra.mxu0 0.0
    %2097 = vmatprep.subr.mxu0 0.0
    %2098 = vmatpush2.msra.mxu0 0.0
    %2099 = vmatprep.subr.mxu0 0.0
    %2100 = vmatpush2.msra.mxu0 0.0
    %2101 = vmatprep.subr.mxu0 0.0
    %2102 = vmatpush2.msra.mxu0 0.0
    %2103 = vmatprep.subr.mxu0 0.0
    %2104 = vmatpush2.msra.mxu0 0.0
    %2105 = vmatprep.subr.mxu0 0.0
    %2106 = vmatpush2.msra.mxu0 0.0
    %2107 = vmatprep.subr.mxu0 0.0
    %2108 = vmatpush2.msra.mxu0 0.0
    %2109 = vmatprep.subr.mxu0 0.0
    %2110 = vmatpush2.msra.mxu0 0.0
    %2111 = vmatprep.mubr.f32.mxu0 0.0
    %2112 = vmatmul.mubr.f32.gmra.mxu0 %v2045
    %v2113 = vpop.f32.mrf.mxu0
    %v2114 = vadd.f32 0.0, %v2113
    %v2115 = vpop.f32.mrf.mxu0
    %2116 = vdwg.mxu0
    %v2117 = vadd.f32 %v2041, %v2114
    %v2118 = vxor.u32 %v2117, 2147483648
    %v2119 = vmul.f32 %v2118, 1.442695
    %v2120 = vpow.pop %v2119
    %v2121 = vadd.f32 %v2120, 1.0
    %v2122 = vrcp.pop %v2121
    %v2123 = vmul.f32 1.0, %v2122
    %v2124 = vadd.f32 %v2114, %v1380
    %2126 = vrot.lane.b32.xlu0 %v2124, 64
    %v2127 = vpop.permute.xlu0 %2126
    %v2129 = vmul.f32 %v2123, %v2127
    %2131 = vrot.lane.b32.xlu0 %v2129, 64
    %v2132 = vpop.permute.xlu0 %2131
    %v2134 = vadd.f32 %v2041, %v2132
    %v2135 = vtanh.pop %v2134
    %v2136 = vsub.f32 %v2040, %v2135
    %2138 = vrot.lane.b32.xlu0 %v2136, 96
    %v2139 = vpop.permute.xlu0 %2138
    %v2141 = vmul.f32 %v2123, %v2139
    %2143 = vrot.lane.b32.xlu0 %v2141, 32
    %v2144 = vpop.permute.xlu0 %2143
    %v2146 = vadd.f32 %v2135, %v2144
    %v2147 = vld [vmem:[%s9] sm:$0xff]
    %v2148 = vld [vmem:[%s9 + $0x8] sm:$0xff]
    %v2149 = vld [vmem:[%s9 + $0x10] sm:$0xff]
    %v2150 = vld [vmem:[%s9 + $0x18] sm:$0xff]
    %v2151 = vld [vmem:[%s10] sm:$0x1]
    %v2153 = vlaneseq
    %v2154 = vshrl.u32 %v2153, 7
    %v2155 = vsub.s32 0, %v2154
    %v2156 = vrot.slane %v2151, %v2155
    %2159 = vrot.lane.b32.xlu0 %v2146, 64
    %v2160 = vpop.permute.xlu0 %2159
    %v2161 = vsel %vm248, %v2160, 0
    %2163 = vmatprep.subr.mxu0 0.0
    %2164 = vmatpush1.msra.mxu0 0.0
    %2165 = vmatprep.subr.mxu0 0.0
    %2166 = vmatpush1.msra.mxu0 0.0
    %2167 = vmatprep.subr.mxu0 0.0
    %2168 = vmatpush1.msra.mxu0 0.0
    %2169 = vmatprep.subr.mxu0 0.0
    %2170 = vmatpush1.msra.mxu0 0.0
    %2171 = vmatprep.subr.mxu0 0.0
    %2172 = vmatpush1.msra.mxu0 0.0
    %2173 = vmatprep.subr.mxu0 0.0
    %2174 = vmatpush1.msra.mxu0 0.0
    %2175 = vmatprep.subr.mxu0 0.0
    %2176 = vmatpush1.msra.mxu0 0.0
    %2177 = vmatprep.subr.mxu0 0.0
    %2178 = vmatpush1.msra.mxu0 0.0
    %2179 = vmatprep.subr.mxu0 0.0
    %2180 = vmatpush1.msra.mxu0 0.0
    %2181 = vmatprep.subr.mxu0 0.0
    %2182 = vmatpush1.msra.mxu0 0.0
    %2183 = vmatprep.subr.mxu0 0.0
    %2184 = vmatpush1.msra.mxu0 0.0
    %2185 = vmatprep.subr.mxu0 0.0
    %2186 = vmatpush1.msra.mxu0 0.0
    %2187 = vmatprep.subr.mxu0 0.0
    %2188 = vmatpush1.msra.mxu0 %v2150
    %2189 = vmatprep.subr.mxu0 0.0
    %2190 = vmatpush1.msra.mxu0 %v2149
    %2191 = vmatprep.subr.mxu0 0.0
    %2192 = vmatpush1.msra.mxu0 %v2148
    %2193 = vmatprep.subr.mxu0 0.0
    %2194 = vmatpush1.msra.mxu0 %v2147
    %2195 = vmatprep.subr.mxu0 0.0
    %2196 = vmatpush2.msra.mxu0 0.0
    %2197 = vmatprep.subr.mxu0 0.0
    %2198 = vmatpush2.msra.mxu0 0.0
    %2199 = vmatprep.subr.mxu0 0.0
    %2200 = vmatpush2.msra.mxu0 0.0
    %2201 = vmatprep.subr.mxu0 0.0
    %2202 = vmatpush2.msra.mxu0 0.0
    %2203 = vmatprep.subr.mxu0 0.0
    %2204 = vmatpush2.msra.mxu0 0.0
    %2205 = vmatprep.subr.mxu0 0.0
    %2206 = vmatpush2.msra.mxu0 0.0
    %2207 = vmatprep.subr.mxu0 0.0
    %2208 = vmatpush2.msra.mxu0 0.0
    %2209 = vmatprep.subr.mxu0 0.0
    %2210 = vmatpush2.msra.mxu0 0.0
    %2211 = vmatprep.subr.mxu0 0.0
    %2212 = vmatpush2.msra.mxu0 0.0
    %2213 = vmatprep.subr.mxu0 0.0
    %2214 = vmatpush2.msra.mxu0 0.0
    %2215 = vmatprep.subr.mxu0 0.0
    %2216 = vmatpush2.msra.mxu0 0.0
    %2217 = vmatprep.subr.mxu0 0.0
    %2218 = vmatpush2.msra.mxu0 0.0
    %2219 = vmatprep.subr.mxu0 0.0
    %2220 = vmatpush2.msra.mxu0 0.0
    %2221 = vmatprep.subr.mxu0 0.0
    %2222 = vmatpush2.msra.mxu0 0.0
    %2223 = vmatprep.subr.mxu0 0.0
    %2224 = vmatpush2.msra.mxu0 0.0
    %2225 = vmatprep.subr.mxu0 0.0
    %2226 = vmatpush2.msra.mxu0 0.0
    %2227 = vmatprep.mubr.f32.mxu0 0.0
    %2228 = vmatmul.mubr.f32.gmra.mxu0 %v2161
    %v2229 = vpop.f32.mrf.mxu0
    %v2230 = vadd.f32 %v2156, %v2229
    %v2231 = vpop.f32.mrf.mxu0
    %2232 = vdwg.mxu0
    %vm2233 = vcmask 80896
    %v2234 = vsel %vm2233, %v2230, -inf
    %2235 = vmax.xlane.f32.xlu0 %v2234
    %v2236 = vpop.xlane.xlu0 %2235
    %v2237 = vsub.f32 %v2230, %v2236
    %v2238 = vmul.f32 %v2237, 1.442695
    %v2239 = vpow.pop %v2238
    %v2240 = vsel %vm2233, %v2239, 0.0
    %2241 = vadd.xlane.f32.xlu0 %v2240
    %v2242 = vpop.xlane.xlu0 %2241
    %v2243 = vlog2.pop %v2242
    %v2244 = vmul.f32 %v2243, 0.6931472
    %v2245 = vadd.f32 %v2244, %v2236
    %v2246 = vsub.f32 %v2230, %v2245
    %2247 = vst.msk [vmem:[#allocation12] sm:$0xff] %vm2233, %v2246
    // Predicated region
    $region62: #{tpu_custom_call.1} parent=1 // pred_check
      _
    $region63: #{tpu_custom_call.1} parent=1 // pred_check_branch
      %2249 = sbr.rel (0) target = $region65
    $region64: #{tpu_custom_call.1} parent=1 // pred_region
      %s2251 = ssub.s32 128, 128
      %2252 = vsyncadd [#allocation6], %s2251
      %s2254 = sshll.u32 [#allocation12], 4
      %s2255 = int_to_ptr.vmem [resolvable:$true] %s2254
      %2257 = dma.vmem_to_hbm [thread:$0]  %s2255, 128, %s11, [#allocation6]
    $region65: #{tpu_custom_call.1} parent=1 // pred_fallthru
      _
    // Predicated region
    $region66: #{tpu_custom_call.1} parent=1 // pred_check
      _
    $region67: #{tpu_custom_call.1} parent=1 // pred_check_branch
      %2259 = sbr.rel (0) target = $region69
    $region68: #{tpu_custom_call.1} parent=1 // pred_region
      %2260 = dma.done [#allocation6], 128
    $region69: #{tpu_custom_call.1} parent=1 // pred_fallthru
      _
    %2261 = vsyncpa [#allocation5], 1
    %2262 = vsyncpa [#allocation8], 1
    %2263 = vsyncpa [#allocation11], 1
    %2264 = vsyncpa [#allocation6], 1

</llo_original>
